<compile_context>
chip_gen: v5e
topology: v5e:2x2
jax: 0.10.0
libtpu: 0.0.40
codegen_flags: <defaults>
</compile_context>

<pallas_src>
import math
import jax
import jax.numpy as jnp
from jax.experimental import pallas as pl
from jax.experimental.pallas import tpu as pltpu

# ---------------- demo shapes (constructor args of the module) ---------------
BATCH = 4
SEQ = 256
EMBED = 128          # embed_dim  (multiple of 128 -> lane-dense loads/stores)
FF_DIM = 256         # ff_dim     (multiple of 128 -> MXU-aligned contraction)
LEAKY_SLOPE = 0.01   # nn.LeakyReLU default negative_slope
TM = 512             # tokens per grid step; (TM, EMBED) f32 tile = 256 KiB


def _round_up(n, m):
    return ((n + m - 1) // m) * m


# ---------------- kernel -----------------------------------------------------
def ffn_kernel(x_ref, w1t_ref, b1_ref, w2t_ref, b2_ref, o_ref):
    """One M-tile of the FFN.

    x_ref:   (tm, E)   activation tile (streams through the grid)
    w1t_ref: (E, F)    lin1 weight, pre-transposed (VMEM-resident, all steps)
    b1_ref:  (1, F)
    w2t_ref: (F, E)    lin2 weight, pre-transposed (VMEM-resident, all steps)
    b2_ref:  (1, E)
    o_ref:   (tm, E)
    """
    x = x_ref[...]
    h = jnp.dot(x, w1t_ref[...], preferred_element_type=jnp.float32) + b1_ref[...]
    h = jnp.where(h >= 0, h, LEAKY_SLOPE * h)          # LeakyReLU (VPU, elementwise)
    out = jnp.dot(h, w2t_ref[...], preferred_element_type=jnp.float32) + b2_ref[...]
    o_ref[...] = out.astype(o_ref.dtype)


# ---------------- wrapper -----------------------------------------------------
def feed_forward(x, w1t, b1, w2t, b2, *, tm=TM):
    """x: (..., E).  w1t: (E, F), b1: (1, F), w2t: (F, E), b2: (1, E).

    Weights must already be in kernel layout (see pack_params) so no per-call
    transpose is emitted.
    """
    orig_shape = x.shape
    E = orig_shape[-1]
    F = w1t.shape[1]
    x2 = x.reshape(-1, E)                       # flatten (B, S, E) -> (M, E)
    M = x2.shape[0]

    # M-tile: large to amortize per-step overhead; 8-aligned for (8,128) tiling.
    tm = min(tm, _round_up(M, 8))
    Mp = _round_up(M, tm)
    if Mp != M:
        x2 = jnp.pad(x2, ((0, Mp - M), (0, 0)))

    out = pl.pallas_call(
        ffn_kernel,
        out_shape=jax.ShapeDtypeStruct((Mp, E), x.dtype),
        grid_spec=pltpu.PrefetchScalarGridSpec(
            num_scalar_prefetch=0,
            grid=(Mp // tm,),
            in_specs=[
                pl.BlockSpec((tm, E), lambda i: (i, 0)),   # x tile streams over M
                pl.BlockSpec((E, F), lambda i: (0, 0)),    # weights stay resident
                pl.BlockSpec((1, F), lambda i: (0, 0)),
                pl.BlockSpec((F, E), lambda i: (0, 0)),
                pl.BlockSpec((1, E), lambda i: (0, 0)),
            ],
            out_specs=pl.BlockSpec((tm, E), lambda i: (i, 0)),
        ),
        compiler_params=pltpu.CompilerParams(
            dimension_semantics=("parallel",),   # shard M-steps across TCs (v7x)
        ),
    )(x2, w1t, b1, w2t, b2)

    if Mp != M:
        out = out[:M]
    return out.reshape(orig_shape)


# ---------------- deterministic parameter construction ------------------------
def xavier_uniform(key, shape):
    fan_out, fan_in = shape                    # nn.Linear weight is (out, in)
    bound = math.sqrt(6.0 / (fan_in + fan_out))
    return jax.random.uniform(key, shape, jnp.float32, -bound, bound)


def build_params(key, embed=EMBED, ff=FF_DIM):
    """PyTorch-layout params, matching FeedForward.init_weights() exactly."""
    k1, k2 = jax.random.split(key, 2)
    w1 = xavier_uniform(k1, (ff, embed))       # lin1.weight  (xavier_uniform_)
    b1 = jnp.zeros((ff,), jnp.float32)         # lin1.bias    (zeros_)
    w2 = xavier_uniform(k2, (embed, ff))       # lin2.weight  (xavier_uniform_)
    b2 = jnp.zeros((embed,), jnp.float32)      # lin2.bias    (zeros_)
    return w1, b1, w2, b2


def pack_params(w1, b1, w2, b2):
    """One-time repack into kernel layout (done at build time, not per call)."""
    return w1.T, b1.reshape(1, -1), w2.T, b2.reshape(1, -1)


if __name__ == "__main__":
    key = jax.random.PRNGKey(0)
    pkey, xkey = jax.random.split(key)
    w1, b1, w2, b2 = build_params(pkey)
    w1t, b1p, w2t, b2p = pack_params(w1, b1, w2, b2)   # one-time, outside hot path

    x = jax.random.normal(xkey, (BATCH, SEQ, EMBED), jnp.float32)

    ffn = jax.jit(feed_forward)
    out = jax.block_until_ready(ffn(x, w1t, b1p, w2t, b2p))

    # reference check (pure JAX, full-precision matmuls) to guard semantics
    hp = jax.lax.Precision.HIGHEST
    h_ref = jnp.dot(x, w1.T, precision=hp) + b1
    h_ref = jnp.where(h_ref >= 0, h_ref, LEAKY_SLOPE * h_ref)
    ref = jnp.dot(h_ref, w2.T, precision=hp) + b2

    assert out.shape == (BATCH, SEQ, EMBED) and out.dtype == jnp.float32
    assert bool(jnp.all(jnp.isfinite(out)))
    assert bool(jnp.allclose(out, ref, atol=1e-3, rtol=1e-3))
    print("KERNEL_OK")
</pallas_src>

<mosaic_0001>
module attributes {stable_mosaic.version = 11 : i64} {
  func.func @ffn_kernel(%arg0: i32, %arg1: memref<512x128xf32, #tpu.memory_space<vmem>>, %arg2: memref<128x256xf32, #tpu.memory_space<vmem>>, %arg3: memref<1x256xf32, #tpu.memory_space<vmem>>, %arg4: memref<256x128xf32, #tpu.memory_space<vmem>>, %arg5: memref<1x128xf32, #tpu.memory_space<vmem>>, %arg6: memref<512x128xf32, #tpu.memory_space<vmem>>) attributes {dimension_semantics = [#tpu.dimension_semantics<parallel>], iteration_bounds = array<i64: 2>, scalar_prefetch = 0 : i64, scratch_operands = 0 : i64, tpu.core_type = #tpu.core_type<tc>, window_params = [{transform_indices = @transform_0, window_bounds = array<i64: 512, 128>}, {pipeline_mode = #tpu.pipeline_mode<synchronous>, transform_indices = @transform_1, window_bounds = array<i64: 128, 256>}, {pipeline_mode = #tpu.pipeline_mode<synchronous>, transform_indices = @transform_2, window_bounds = array<i64: 1, 256>}, {pipeline_mode = #tpu.pipeline_mode<synchronous>, transform_indices = @transform_3, window_bounds = array<i64: 256, 128>}, {pipeline_mode = #tpu.pipeline_mode<synchronous>, transform_indices = @transform_4, window_bounds = array<i64: 1, 128>}, {transform_indices = @transform_5, window_bounds = array<i64: 512, 128>}]} {
    %c0 = arith.constant 0 : index
    %c0_0 = arith.constant 0 : index
    %0 = vector.load %arg1[%c0, %c0_0] : memref<512x128xf32, #tpu.memory_space<vmem>>, vector<512x128xf32>
    %c0_1 = arith.constant 0 : index
    %c0_2 = arith.constant 0 : index
    %1 = vector.load %arg2[%c0_1, %c0_2] : memref<128x256xf32, #tpu.memory_space<vmem>>, vector<128x256xf32>
    %cst = arith.constant dense<0.000000e+00> : vector<512x256xf32>
    %2 = tpu.matmul %0, %1, %cst {dimension_numbers = #tpu.dot_dimension_numbers<[1], [0], [0], [1], [0, 0, 1, 1], [], []>} : vector<512x128xf32>, vector<128x256xf32>, vector<512x256xf32> -> vector<512x256xf32>
    %c0_3 = arith.constant 0 : index
    %c0_4 = arith.constant 0 : index
    %3 = vector.load %arg3[%c0_3, %c0_4] : memref<1x256xf32, #tpu.memory_space<vmem>>, vector<1x256xf32>
    %4 = vector.broadcast %3 : vector<1x256xf32> to vector<512x256xf32>
    %5 = arith.addf %2, %4 : vector<512x256xf32>
    %cst_5 = arith.constant 0.000000e+00 : f32
    %6 = vector.broadcast %cst_5 : f32 to vector<512x256xf32>
    %7 = arith.cmpf oge, %5, %6 : vector<512x256xf32>
    %cst_6 = arith.constant 0.00999999977 : f32
    %8 = vector.broadcast %cst_6 : f32 to vector<512x256xf32>
    %9 = arith.mulf %8, %5 : vector<512x256xf32>
    %10 = arith.select %7, %5, %9 : vector<512x256xi1>, vector<512x256xf32>
    %c0_7 = arith.constant 0 : index
    %c0_8 = arith.constant 0 : index
    %11 = vector.load %arg4[%c0_7, %c0_8] : memref<256x128xf32, #tpu.memory_space<vmem>>, vector<256x128xf32>
    %cst_9 = arith.constant dense<0.000000e+00> : vector<512x128xf32>
    %12 = tpu.matmul %10, %11, %cst_9 {dimension_numbers = #tpu.dot_dimension_numbers<[1], [0], [0], [1], [0, 0, 1, 1], [], []>} : vector<512x256xf32>, vector<256x128xf32>, vector<512x128xf32> -> vector<512x128xf32>
    %c0_10 = arith.constant 0 : index
    %c0_11 = arith.constant 0 : index
    %13 = vector.load %arg5[%c0_10, %c0_11] : memref<1x128xf32, #tpu.memory_space<vmem>>, vector<1x128xf32>
    %14 = vector.broadcast %13 : vector<1x128xf32> to vector<512x128xf32>
    %15 = arith.addf %12, %14 : vector<512x128xf32>
    %c0_12 = arith.constant 0 : index
    %c0_13 = arith.constant 0 : index
    %16 = vector.load %arg6[%c0_12, %c0_13] : memref<512x128xf32, #tpu.memory_space<vmem>>, vector<512x128xf32>
    tpu.vector_store %arg6[%c0_12, %c0_13], %15 {strides = array<i32>} : memref<512x128xf32, #tpu.memory_space<vmem>>, vector<512x128xf32>,
    return
  }
  func.func @transform_0(%arg0: i32) -> (i32, i32) {
    %c0_i32 = arith.constant 0 : i32
    %c0_i32_0 = arith.constant 0 : i32
    return %arg0, %c0_i32 : i32, i32
  }
  func.func @transform_1(%arg0: i32) -> (i32, i32) {
    %c0_i32 = arith.constant 0 : i32
    %c0_i32_0 = arith.constant 0 : i32
    %c0_i32_1 = arith.constant 0 : i32
    return %c0_i32, %c0_i32_0 : i32, i32
  }
  func.func @transform_2(%arg0: i32) -> (i32, i32) {
    %c0_i32 = arith.constant 0 : i32
    %c0_i32_0 = arith.constant 0 : i32
    %c0_i32_1 = arith.constant 0 : i32
    return %c0_i32, %c0_i32_0 : i32, i32
  }
  func.func @transform_3(%arg0: i32) -> (i32, i32) {
    %c0_i32 = arith.constant 0 : i32
    %c0_i32_0 = arith.constant 0 : i32
    %c0_i32_1 = arith.constant 0 : i32
    return %c0_i32, %c0_i32_0 : i32, i32
  }
  func.func @transform_4(%arg0: i32) -> (i32, i32) {
    %c0_i32 = arith.constant 0 : i32
    %c0_i32_0 = arith.constant 0 : i32
    %c0_i32_1 = arith.constant 0 : i32
    return %c0_i32, %c0_i32_0 : i32, i32
  }
  func.func @transform_5(%arg0: i32) -> (i32, i32) {
    %c0_i32 = arith.constant 0 : i32
    %c0_i32_0 = arith.constant 0 : i32
    return %arg0, %c0_i32 : i32, i32
  }
}

</mosaic_0001>

<llo_original>
// kernel: feed_forward.1
$region0: #{feed_forward.1}
  #allocation0 [shape = 'u32[]', space=smem, size = 0x4, offset = 0x4, fixed_abs, tag = 'smem constant byte address 0x4 - core index']
  #allocation1 [shape = 'u32[72,128]{1,0:T(1,128)}', space=vmem, size = 0x9000, scoped, tag = 'internal scratch']
  %s0 = inlined_call_operand.hbm [shape: f32[1024,128], index: 0, kind: input, shape index: {}]
  %s1 = inlined_call_operand.hbm [shape: f32[128,256], index: 1, kind: input, shape index: {}]
  %s2 = inlined_call_operand.vmem [shape: f32[1,256], index: 2, kind: input, shape index: {}]
  %s3 = inlined_call_operand.hbm [shape: f32[256,128], index: 3, kind: input, shape index: {}]
  %s4 = inlined_call_operand.vmem [shape: f32[1,128], index: 4, kind: input, shape index: {}]
  %s5 = inlined_call_operand.hbm [shape: f32[1024,128], index: 5, kind: output, shape index: {}]
  %s6 = sld [smem:[#allocation0]]
  $region65: #{feed_forward.1} parent=0
    _
  %s8 = ssub.s32 1, %s6
  %s9 = scalar_select 0, %s8, %s6
  $region1: #{feed_forward.1} parent=0
    #allocation2 [shape = 'u8[524288]{0}', space=vmem, size = 0x80000, scoped, tag = 'input window, operand 0']
    #allocation3 [shape = 's32[2]{0}', space=sflag, size = 0x8, scoped, tag = 'scoped memory for feed_forward.1']
    #allocation4 [shape = 's32[2]{0}', space=sflag, size = 0x8, scoped, tag = 'scoped memory for feed_forward.1']
    #allocation5 [shape = 'u8[131072]{0}', space=vmem, size = 0x20000, scoped, tag = 'input window, operand 1, single buffered']
    #allocation6 [shape = 's32[1]{0}', space=sflag, size = 0x4, scoped, tag = 'scoped memory for feed_forward.1']
    #allocation7 [shape = 'u8[131072]{0}', space=vmem, size = 0x20000, scoped, tag = 'input window, operand 3, single buffered']
    #allocation8 [shape = 'u8[524288]{0}', space=vmem, size = 0x80000, scoped, tag = 'output window, operand 0']
    %10 = vsyncpa [#allocation3], 0
    %s11 = scalar_lea.sflag [#allocation3], 1
    %12 = vsyncpa %s11, 0
    %13 = vsyncpa [#allocation6], 0
    %14 = vsyncpa [#allocation4], 0
    %s15 = scalar_lea.sflag [#allocation4], 1
    %16 = vsyncpa %s15, 0
    loop: start=0, step=1, limit=4
    $region2: #{feed_forward.1} parent=1 // loop_pre_header
      _
    $region3: #{feed_forward.1} parent=1 // loop_header
      %s18 = sphi 0, %s22
      %p19 = scmp.ge.s32.totalorder %s18, 4
      %s28 = sphi 0, %s30
      %s31 = sphi 0, %s28
      %s32 = sphi 0, %s31
      %s48 = sphi 0, %s32
      %s52 = sphi 0, %s52
      %s54 = sphi 0, %s52
      %s55 = sphi 0, %s54
      %s69 = sphi 0, %s55
      %s73 = sphi 0, %s73
      %s75 = sphi 0, %s73
      %s76 = sphi 0, %s75
      %s90 = sphi 0, %s76
      %s94 = sphi 0, %s94
      %s96 = sphi 0, %s94
      %s97 = sphi 0, %s96
      %s111 = sphi 0, %s97
      %s115 = sphi 0, %s115
      %s117 = sphi 0, %s115
      %s118 = sphi 0, %s117
      %s132 = sphi 0, %s118
      %s138 = sphi 0, %s140
      %s141 = sphi 0, %s138
      %s142 = sphi 0, %s141
      %s158 = sphi 0, %s142
    $region4: #{feed_forward.1} parent=1 // loop_header_branch
      %21 = sbr.rel (%p19) target = $region8
    $region5: #{feed_forward.1} parent=1 // loop_body
      %s23 = ssub.s32 %s18, 1
      %s24 = ssub.s32 %s18, 2
      %s25 = sadd.s32 %s18, 1
      %s26 = ssub.s32 %s18, %s25
      %p27 = scmp.eq.s32.totalorder %s26, 0
      %s29 = sadd.s32 %s28, 1
      %s30 = scalar_select %p27, %s28, %s29
      %p33 = pneg %p27
      %p34 = scmp.eq.s32.totalorder %s18, 1
      %p35 = por %p33, %p34
      %p36 = scmp.ne.s32.totalorder %s28, %s31
      %p37 = scmp.eq.s32.totalorder %s18, 0
      %p38 = por %p36, %p37
      %p39 = scmp.ne.s32.totalorder %s28, %s31
      %p40 = scmp.eq.s32.totalorder %s23, 1
      %p41 = por %p39, %p40
      %p42 = scmp.ne.s32.totalorder %s31, %s32
      %p43 = scmp.eq.s32.totalorder %s23, 0
      %p44 = por %p42, %p43
      %p45 = scmp.ne.s32.totalorder %s31, %s32
      %p46 = scmp.eq.s32.totalorder %s24, 1
      %p47 = por %p45, %p46
      %p49 = scmp.ne.s32.totalorder %s32, %s48
      %p50 = scmp.eq.s32.totalorder %s24, 0
      %p51 = por %p49, %p50
      %s53 = sadd.s32 %s52, 1
      %p56 = scmp.eq.s32.totalorder %s18, 1
      %p57 = scmp.ne.s32.totalorder %s52, %s54
      %p58 = scmp.eq.s32.totalorder %s18, 0
      %p59 = por %p57, %p58
      %p60 = scmp.ne.s32.totalorder %s52, %s54
      %p61 = scmp.eq.s32.totalorder %s23, 1
      %p62 = por %p60, %p61
      %p63 = scmp.ne.s32.totalorder %s54, %s55
      %p64 = scmp.eq.s32.totalorder %s23, 0
      %p65 = por %p63, %p64
      %p66 = scmp.ne.s32.totalorder %s54, %s55
      %p67 = scmp.eq.s32.totalorder %s24, 1
      %p68 = por %p66, %p67
      %p70 = scmp.ne.s32.totalorder %s55, %s69
      %p71 = scmp.eq.s32.totalorder %s24, 0
      %p72 = por %p70, %p71
      %s74 = sadd.s32 %s73, 1
      %p77 = scmp.eq.s32.totalorder %s18, 1
      %p78 = scmp.ne.s32.totalorder %s73, %s75
      %p79 = scmp.eq.s32.totalorder %s18, 0
      %p80 = por %p78, %p79
      %p81 = scmp.ne.s32.totalorder %s73, %s75
      %p82 = scmp.eq.s32.totalorder %s23, 1
      %p83 = por %p81, %p82
      %p84 = scmp.ne.s32.totalorder %s75, %s76
      %p85 = scmp.eq.s32.totalorder %s23, 0
      %p86 = por %p84, %p85
      %p87 = scmp.ne.s32.totalorder %s75, %s76
      %p88 = scmp.eq.s32.totalorder %s24, 1
      %p89 = por %p87, %p88
      %p91 = scmp.ne.s32.totalorder %s76, %s90
      %p92 = scmp.eq.s32.totalorder %s24, 0
      %p93 = por %p91, %p92
      %s95 = sadd.s32 %s94, 1
      %p98 = scmp.eq.s32.totalorder %s18, 1
      %p99 = scmp.ne.s32.totalorder %s94, %s96
      %p100 = scmp.eq.s32.totalorder %s18, 0
      %p101 = por %p99, %p100
      %p102 = scmp.ne.s32.totalorder %s94, %s96
      %p103 = scmp.eq.s32.totalorder %s23, 1
      %p104 = por %p102, %p103
      %p105 = scmp.ne.s32.totalorder %s96, %s97
      %p106 = scmp.eq.s32.totalorder %s23, 0
      %p107 = por %p105, %p106
      %p108 = scmp.ne.s32.totalorder %s96, %s97
      %p109 = scmp.eq.s32.totalorder %s24, 1
      %p110 = por %p108, %p109
      %p112 = scmp.ne.s32.totalorder %s97, %s111
      %p113 = scmp.eq.s32.totalorder %s24, 0
      %p114 = por %p112, %p113
      %s116 = sadd.s32 %s115, 1
      %p119 = scmp.eq.s32.totalorder %s18, 1
      %p120 = scmp.ne.s32.totalorder %s115, %s117
      %p121 = scmp.eq.s32.totalorder %s18, 0
      %p122 = por %p120, %p121
      %p123 = scmp.ne.s32.totalorder %s115, %s117
      %p124 = scmp.eq.s32.totalorder %s23, 1
      %p125 = por %p123, %p124
      %p126 = scmp.ne.s32.totalorder %s117, %s118
      %p127 = scmp.eq.s32.totalorder %s23, 0
      %p128 = por %p126, %p127
      %p129 = scmp.ne.s32.totalorder %s117, %s118
      %p130 = scmp.eq.s32.totalorder %s24, 1
      %p131 = por %p129, %p130
      %p133 = scmp.ne.s32.totalorder %s118, %s132
      %p134 = scmp.eq.s32.totalorder %s24, 0
      %p135 = por %p133, %p134
      %s136 = ssub.s32 %s18, %s25
      %p137 = scmp.eq.s32.totalorder %s136, 0
      %s139 = sadd.s32 %s138, 1
      %s140 = scalar_select %p137, %s138, %s139
      %p143 = pneg %p137
      %p144 = scmp.eq.s32.totalorder %s18, 1
      %p145 = por %p143, %p144
      %p146 = scmp.ne.s32.totalorder %s138, %s141
      %p147 = scmp.eq.s32.totalorder %s18, 0
      %p148 = por %p146, %p147
      %p149 = scmp.ne.s32.totalorder %s138, %s141
      %p150 = scmp.eq.s32.totalorder %s23, 1
      %p151 = por %p149, %p150
      %p152 = scmp.ne.s32.totalorder %s141, %s142
      %p153 = scmp.eq.s32.totalorder %s23, 0
      %p154 = por %p152, %p153
      %p155 = scmp.ne.s32.totalorder %s141, %s142
      %p156 = scmp.eq.s32.totalorder %s24, 1
      %p157 = por %p155, %p156
      %p159 = scmp.ne.s32.totalorder %s142, %s158
      %p160 = scmp.eq.s32.totalorder %s24, 0
      %p161 = por %p159, %p160
      %p162 = scmp.le.s32.totalorder 1, %s18
      %p163 = scmp.lt.s32.totalorder %s18, 3
      %p164 = pnand %p162, %p163
      %p165 = pneg %p164
      // Predicated region
      $region9: #{feed_forward.1} parent=5 // pred_check
        _
      $region10: #{feed_forward.1} parent=5 // pred_check_branch
        %167 = sbr.rel (%p164) target = $region12
      $region11: #{feed_forward.1} parent=5 // pred_region
        %s168 = ssub.s32 %s18, 1
        // Predicated region
        $region13: #{feed_forward.1} parent=11 // pred_check
          %p169 = pneg %p65
        $region14: #{feed_forward.1} parent=11 // pred_check_branch
          %171 = sbr.rel (%p169) target = $region16
        $region15: #{feed_forward.1} parent=11 // pred_region
          %173 = vsyncadd [#allocation6], 0
          %s174 = sshll.u32 %s1, 4
          %s175 = int_to_ptr.hbm [resolvable:$true] %s174
          %s176 = sshll.u32 [#allocation5], 4
          %s177 = int_to_ptr.vmem [resolvable:$true] %s176
          %182 = dma.hbm_to_vmem [thread:$0]  %s175, 4096, %s177, [#allocation6], 256, 256, 16
        $region16: #{feed_forward.1} parent=11 // pred_fallthru
          _
        // Predicated region
        $region17: #{feed_forward.1} parent=11 // pred_check
          %p183 = pneg %p86
        $region18: #{feed_forward.1} parent=11 // pred_check_branch
          %185 = sbr.rel (%p183) target = $region20
        $region19: #{feed_forward.1} parent=11 // pred_region
          _
        $region20: #{feed_forward.1} parent=11 // pred_fallthru
          _
        // Predicated region
        $region21: #{feed_forward.1} parent=11 // pred_check
          %p186 = pneg %p107
        $region22: #{feed_forward.1} parent=11 // pred_check_branch
          %188 = sbr.rel (%p186) target = $region24
        $region23: #{feed_forward.1} parent=11 // pred_region
          %190 = vsyncadd [#allocation6], 0
          %s191 = sshll.u32 %s3, 4
          %s192 = int_to_ptr.hbm [resolvable:$true] %s191
          %s193 = sshll.u32 [#allocation7], 4
          %s194 = int_to_ptr.vmem [resolvable:$true] %s193
          %199 = dma.hbm_to_vmem [thread:$0]  %s192, 4096, %s194, [#allocation6], 128, 128, 8
        $region24: #{feed_forward.1} parent=11 // pred_fallthru
          _
        // Predicated region
        $region25: #{feed_forward.1} parent=11 // pred_check
          %p200 = pneg %p128
        $region26: #{feed_forward.1} parent=11 // pred_check_branch
          %202 = sbr.rel (%p200) target = $region28
        $region27: #{feed_forward.1} parent=11 // pred_region
          _
        $region28: #{feed_forward.1} parent=11 // pred_fallthru
          _
      $region12: #{feed_forward.1} parent=5 // pred_fallthru
        _
      %p203 = scmp.lt.s32.totalorder %s18, 2
      // Predicated region
      $region29: #{feed_forward.1} parent=5 // pred_check
        %p204 = pneg %p203
      $region30: #{feed_forward.1} parent=5 // pred_check_branch
        %206 = sbr.rel (%p204) target = $region32
      $region31: #{feed_forward.1} parent=5 // pred_region
        // Predicated region
        $region33: #{feed_forward.1} parent=31 // pred_check
          %p207 = pneg %p38
        $region34: #{feed_forward.1} parent=31 // pred_check_branch
          %209 = sbr.rel (%p207) target = $region36
        $region35: #{feed_forward.1} parent=31 // pred_region
          %s210 = sand.u32 %s28, 1
          %s211 = scalar_lea.sflag [#allocation3], %s210
          %s212 = sand.u32 %s28, 1
          %s213 = smul.addr %s212, 512
          %s214 = scalar_lea.vmem [#allocation2], %s213
          %s215 = smul.u32 64, %s18
          %217 = vsyncadd %s211, 0
          %s218 = smul.addr %s215, 8
          %s219 = scalar_lea.hbm %s0, %s218
          %s220 = sshll.u32 %s219, 4
          %s221 = int_to_ptr.hbm [resolvable:$true] %s220
          %s222 = sshll.u32 %s214, 4
          %s223 = int_to_ptr.vmem [resolvable:$true] %s222
          %228 = dma.hbm_to_vmem [thread:$0]  %s221, 8192, %s223, %s211, 128, 128, 8
        $region36: #{feed_forward.1} parent=31 // pred_fallthru
          _
      $region32: #{feed_forward.1} parent=5 // pred_fallthru
        _
      %p229 = scmp.le.s32.totalorder 1, %s18
      %p230 = scmp.lt.s32.totalorder %s18, 3
      %p231 = pnand %p229, %p230
      %p232 = pneg %p231
      // Predicated region
      $region37: #{feed_forward.1} parent=5 // pred_check
        _
      $region38: #{feed_forward.1} parent=5 // pred_check_branch
        %234 = sbr.rel (%p231) target = $region40
      $region39: #{feed_forward.1} parent=5 // pred_region
        %s235 = ssub.s32 %s18, 1
        %s236 = sand.u32 %s31, 1
        %s237 = scalar_lea.sflag [#allocation3], %s236
        %s238 = sand.u32 %s31, 1
        %s239 = smul.addr %s238, 512
        %s240 = scalar_lea.vmem [#allocation2], %s239
        // Predicated region
        $region41: #{feed_forward.1} parent=39 // pred_check
          %p241 = pneg %p44
        $region42: #{feed_forward.1} parent=39 // pred_check_branch
          %243 = sbr.rel (%p241) target = $region44
        $region43: #{feed_forward.1} parent=39 // pred_region
          %245 = dma.done %s237, 8192
        $region44: #{feed_forward.1} parent=39 // pred_fallthru
          _
        // Predicated region
        $region45: #{feed_forward.1} parent=39 // pred_check
          %p246 = pneg %p65
        $region46: #{feed_forward.1} parent=39 // pred_check_branch
          %248 = sbr.rel (%p246) target = $region48
        $region47: #{feed_forward.1} parent=39 // pred_region
          %250 = dma.done [#allocation6], 4096
        $region48: #{feed_forward.1} parent=39 // pred_fallthru
          _
        // Predicated region
        $region49: #{feed_forward.1} parent=39 // pred_check
          %p251 = pneg %p107
        $region50: #{feed_forward.1} parent=39 // pred_check_branch
          %253 = sbr.rel (%p251) target = $region52
        $region51: #{feed_forward.1} parent=39 // pred_region
          %255 = dma.done [#allocation6], 4096
        $region52: #{feed_forward.1} parent=39 // pred_fallthru
          _
        %s256 = sand.u32 %s31, 1
        %s257 = scalar_lea.sflag [#allocation3], %s256
        %s258 = sand.u32 %s31, 1
        %s259 = smul.addr %s258, 512
        %s260 = scalar_lea.vmem [#allocation2], %s259
        %p261 = pneg %p44
        %p262 = pneg %p41
        %p263 = pneg %p65
        %p264 = pneg %p62
        %p265 = pneg %p86
        %p266 = pneg %p83
        %p267 = pneg %p107
        %p268 = pneg %p104
        %p269 = pneg %p128
        %p270 = pneg %p125
        %p271 = pneg %p154
        %p272 = pneg %p151
        %s273 = sand.u32 %s141, 1
        %s274 = scalar_lea.sflag [#allocation4], %s273
        %s275 = sand.u32 %s141, 1
        %s276 = smul.addr %s275, 512
        %s277 = scalar_lea.vmem [#allocation8], %s276
        %s278 = smul.u32 64, %s23
        %s279 = smul.u32 64, %s23
        %v280 = vld [vmem:[%s240] sm:$0xff]
        %v281 = vld [vmem:[%s240 + $0x8] sm:$0xff]
        %v282 = vld [vmem:[%s240 + $0x10] sm:$0xff]
        %v283 = vld [vmem:[%s240 + $0x18] sm:$0xff]
        %v284 = vld [vmem:[%s240 + $0x20] sm:$0xff]
        %v285 = vld [vmem:[%s240 + $0x28] sm:$0xff]
        %v286 = vld [vmem:[%s240 + $0x30] sm:$0xff]
        %v287 = vld [vmem:[%s240 + $0x38] sm:$0xff]
        %v288 = vld [vmem:[%s240 + $0x40] sm:$0xff]
        %v289 = vld [vmem:[%s240 + $0x48] sm:$0xff]
        %v290 = vld [vmem:[%s240 + $0x50] sm:$0xff]
        %v291 = vld [vmem:[%s240 + $0x58] sm:$0xff]
        %v292 = vld [vmem:[%s240 + $0x60] sm:$0xff]
        %v293 = vld [vmem:[%s240 + $0x68] sm:$0xff]
        %v294 = vld [vmem:[%s240 + $0x70] sm:$0xff]
        %v295 = vld [vmem:[%s240 + $0x78] sm:$0xff]
        %v296 = vld [vmem:[%s240 + $0x80] sm:$0xff]
        %v297 = vld [vmem:[%s240 + $0x88] sm:$0xff]
        %v298 = vld [vmem:[%s240 + $0x90] sm:$0xff]
        %v299 = vld [vmem:[%s240 + $0x98] sm:$0xff]
        %v300 = vld [vmem:[%s240 + $0xa0] sm:$0xff]
        %v301 = vld [vmem:[%s240 + $0xa8] sm:$0xff]
        %v302 = vld [vmem:[%s240 + $0xb0] sm:$0xff]
        %v303 = vld [vmem:[%s240 + $0xb8] sm:$0xff]
        %v304 = vld [vmem:[%s240 + $0xc0] sm:$0xff]
        %v305 = vld [vmem:[%s240 + $0xc8] sm:$0xff]
        %v306 = vld [vmem:[%s240 + $0xd0] sm:$0xff]
        %v307 = vld [vmem:[%s240 + $0xd8] sm:$0xff]
        %v308 = vld [vmem:[%s240 + $0xe0] sm:$0xff]
        %v309 = vld [vmem:[%s240 + $0xe8] sm:$0xff]
        %v310 = vld [vmem:[%s240 + $0xf0] sm:$0xff]
        %v311 = vld [vmem:[%s240 + $0xf8] sm:$0xff]
        %v312 = vld [vmem:[%s240 + $0x100] sm:$0xff]
        %v313 = vld [vmem:[%s240 + $0x108] sm:$0xff]
        %v314 = vld [vmem:[%s240 + $0x110] sm:$0xff]
        %v315 = vld [vmem:[%s240 + $0x118] sm:$0xff]
        %v316 = vld [vmem:[%s240 + $0x120] sm:$0xff]
        %v317 = vld [vmem:[%s240 + $0x128] sm:$0xff]
        %v318 = vld [vmem:[%s240 + $0x130] sm:$0xff]
        %v319 = vld [vmem:[%s240 + $0x138] sm:$0xff]
        %v320 = vld [vmem:[%s240 + $0x140] sm:$0xff]
        %v321 = vld [vmem:[%s240 + $0x148] sm:$0xff]
        %v322 = vld [vmem:[%s240 + $0x150] sm:$0xff]
        %v323 = vld [vmem:[%s240 + $0x158] sm:$0xff]
        %v324 = vld [vmem:[%s240 + $0x160] sm:$0xff]
        %v325 = vld [vmem:[%s240 + $0x168] sm:$0xff]
        %v326 = vld [vmem:[%s240 + $0x170] sm:$0xff]
        %v327 = vld [vmem:[%s240 + $0x178] sm:$0xff]
        %v328 = vld [vmem:[%s240 + $0x180] sm:$0xff]
        %v329 = vld [vmem:[%s240 + $0x188] sm:$0xff]
        %v330 = vld [vmem:[%s240 + $0x190] sm:$0xff]
        %v331 = vld [vmem:[%s240 + $0x198] sm:$0xff]
        %v332 = vld [vmem:[%s240 + $0x1a0] sm:$0xff]
        %v333 = vld [vmem:[%s240 + $0x1a8] sm:$0xff]
        %v334 = vld [vmem:[%s240 + $0x1b0] sm:$0xff]
        %v335 = vld [vmem:[%s240 + $0x1b8] sm:$0xff]
        %v336 = vld [vmem:[%s240 + $0x1c0] sm:$0xff]
        %v337 = vld [vmem:[%s240 + $0x1c8] sm:$0xff]
        %v338 = vld [vmem:[%s240 + $0x1d0] sm:$0xff]
        %v339 = vld [vmem:[%s240 + $0x1d8] sm:$0xff]
        %v340 = vld [vmem:[%s240 + $0x1e0] sm:$0xff]
        %v341 = vld [vmem:[%s240 + $0x1e8] sm:$0xff]
        %v342 = vld [vmem:[%s240 + $0x1f0] sm:$0xff]
        %v343 = vld [vmem:[%s240 + $0x1f8] sm:$0xff]
        %v344 = vld [vmem:[#allocation5] sm:$0xff]
        %v345 = vld [vmem:[#allocation5 + $0x8] sm:$0xff]
        %v346 = vld [vmem:[#allocation5 + $0x10] sm:$0xff]
        %v347 = vld [vmem:[#allocation5 + $0x18] sm:$0xff]
        %v348 = vld [vmem:[#allocation5 + $0x20] sm:$0xff]
        %v349 = vld [vmem:[#allocation5 + $0x28] sm:$0xff]
        %v350 = vld [vmem:[#allocation5 + $0x30] sm:$0xff]
        %v351 = vld [vmem:[#allocation5 + $0x38] sm:$0xff]
        %v352 = vld [vmem:[#allocation5 + $0x40] sm:$0xff]
        %v353 = vld [vmem:[#allocation5 + $0x48] sm:$0xff]
        %v354 = vld [vmem:[#allocation5 + $0x50] sm:$0xff]
        %v355 = vld [vmem:[#allocation5 + $0x58] sm:$0xff]
        %v356 = vld [vmem:[#allocation5 + $0x60] sm:$0xff]
        %v357 = vld [vmem:[#allocation5 + $0x68] sm:$0xff]
        %v358 = vld [vmem:[#allocation5 + $0x70] sm:$0xff]
        %v359 = vld [vmem:[#allocation5 + $0x78] sm:$0xff]
        %v360 = vld [vmem:[#allocation5 + $0x80] sm:$0xff]
        %v361 = vld [vmem:[#allocation5 + $0x88] sm:$0xff]
        %v362 = vld [vmem:[#allocation5 + $0x90] sm:$0xff]
        %v363 = vld [vmem:[#allocation5 + $0x98] sm:$0xff]
        %v364 = vld [vmem:[#allocation5 + $0xa0] sm:$0xff]
        %v365 = vld [vmem:[#allocation5 + $0xa8] sm:$0xff]
        %v366 = vld [vmem:[#allocation5 + $0xb0] sm:$0xff]
        %v367 = vld [vmem:[#allocation5 + $0xb8] sm:$0xff]
        %v368 = vld [vmem:[#allocation5 + $0xc0] sm:$0xff]
        %v369 = vld [vmem:[#allocation5 + $0xc8] sm:$0xff]
        %v370 = vld [vmem:[#allocation5 + $0xd0] sm:$0xff]
        %v371 = vld [vmem:[#allocation5 + $0xd8] sm:$0xff]
        %v372 = vld [vmem:[#allocation5 + $0xe0] sm:$0xff]
        %v373 = vld [vmem:[#allocation5 + $0xe8] sm:$0xff]
        %v374 = vld [vmem:[#allocation5 + $0xf0] sm:$0xff]
        %v375 = vld [vmem:[#allocation5 + $0xf8] sm:$0xff]
        %v376 = vld [vmem:[%s2] sm:$0x3]
        %v378 = vperm.slane %v376, 0
        %v379 = vperm.slane %v376, 1
        %382 = vmatpush.msra.mxu0 %v374
        %383 = vmatpush.msra.mxu0 %v372
        %384 = vmatpush.msra.mxu0 %v370
        %385 = vmatpush.msra.mxu0 %v368
        %386 = vmatpush.msra.mxu0 %v366
        %387 = vmatpush.msra.mxu0 %v364
        %388 = vmatpush.msra.mxu0 %v362
        %389 = vmatpush.msra.mxu0 %v360
        %390 = vmatpush.msra.mxu0 %v358
        %391 = vmatpush.msra.mxu0 %v356
        %392 = vmatpush.msra.mxu0 %v354
        %393 = vmatpush.msra.mxu0 %v352
        %394 = vmatpush.msra.mxu0 %v350
        %395 = vmatpush.msra.mxu0 %v348
        %396 = vmatpush.msra.mxu0 %v346
        %397 = vmatpush.msra.mxu0 %v344
        %398 = vmatmul.f32.gmra.mxu0 %v280
        %v399 = vpop.f32.mrf.mxu0
        %v400 = vadd.f32 %v378, %v399
        %401 = vmatmul.f32.gmra.mxu0 %v281
        %v402 = vpop.f32.mrf.mxu0
        %v403 = vadd.f32 %v378, %v402
        %404 = vmatmul.f32.gmra.mxu0 %v282
        %v405 = vpop.f32.mrf.mxu0
        %v406 = vadd.f32 %v378, %v405
        %407 = vmatmul.f32.gmra.mxu0 %v283
        %v408 = vpop.f32.mrf.mxu0
        %v409 = vadd.f32 %v378, %v408
        %410 = vmatmul.f32.gmra.mxu0 %v284
        %v411 = vpop.f32.mrf.mxu0
        %v412 = vadd.f32 %v378, %v411
        %413 = vmatmul.f32.gmra.mxu0 %v285
        %v414 = vpop.f32.mrf.mxu0
        %v415 = vadd.f32 %v378, %v414
        %416 = vmatmul.f32.gmra.mxu0 %v286
        %v417 = vpop.f32.mrf.mxu0
        %v418 = vadd.f32 %v378, %v417
        %419 = vmatmul.f32.gmra.mxu0 %v287
        %v420 = vpop.f32.mrf.mxu0
        %v421 = vadd.f32 %v378, %v420
        %422 = vmatmul.f32.gmra.mxu0 %v288
        %v423 = vpop.f32.mrf.mxu0
        %v424 = vadd.f32 %v378, %v423
        %425 = vmatmul.f32.gmra.mxu0 %v289
        %v426 = vpop.f32.mrf.mxu0
        %v427 = vadd.f32 %v378, %v426
        %428 = vmatmul.f32.gmra.mxu0 %v290
        %v429 = vpop.f32.mrf.mxu0
        %v430 = vadd.f32 %v378, %v429
        %431 = vmatmul.f32.gmra.mxu0 %v291
        %v432 = vpop.f32.mrf.mxu0
        %v433 = vadd.f32 %v378, %v432
        %434 = vmatmul.f32.gmra.mxu0 %v292
        %v435 = vpop.f32.mrf.mxu0
        %v436 = vadd.f32 %v378, %v435
        %437 = vmatmul.f32.gmra.mxu0 %v293
        %v438 = vpop.f32.mrf.mxu0
        %v439 = vadd.f32 %v378, %v438
        %440 = vmatmul.f32.gmra.mxu0 %v294
        %v441 = vpop.f32.mrf.mxu0
        %v442 = vadd.f32 %v378, %v441
        %443 = vmatmul.f32.gmra.mxu0 %v295
        %v444 = vpop.f32.mrf.mxu0
        %v445 = vadd.f32 %v378, %v444
        %446 = vmatmul.f32.gmra.mxu0 %v296
        %v447 = vpop.f32.mrf.mxu0
        %v448 = vadd.f32 %v378, %v447
        %449 = vmatmul.f32.gmra.mxu0 %v297
        %v450 = vpop.f32.mrf.mxu0
        %v451 = vadd.f32 %v378, %v450
        %452 = vmatmul.f32.gmra.mxu0 %v298
        %v453 = vpop.f32.mrf.mxu0
        %v454 = vadd.f32 %v378, %v453
        %455 = vmatmul.f32.gmra.mxu0 %v299
        %v456 = vpop.f32.mrf.mxu0
        %v457 = vadd.f32 %v378, %v456
        %458 = vmatmul.f32.gmra.mxu0 %v300
        %v459 = vpop.f32.mrf.mxu0
        %v460 = vadd.f32 %v378, %v459
        %461 = vmatmul.f32.gmra.mxu0 %v301
        %v462 = vpop.f32.mrf.mxu0
        %v463 = vadd.f32 %v378, %v462
        %464 = vmatmul.f32.gmra.mxu0 %v302
        %v465 = vpop.f32.mrf.mxu0
        %v466 = vadd.f32 %v378, %v465
        %467 = vmatmul.f32.gmra.mxu0 %v303
        %v468 = vpop.f32.mrf.mxu0
        %v469 = vadd.f32 %v378, %v468
        %470 = vmatmul.f32.gmra.mxu0 %v304
        %v471 = vpop.f32.mrf.mxu0
        %v472 = vadd.f32 %v378, %v471
        %473 = vmatmul.f32.gmra.mxu0 %v305
        %v474 = vpop.f32.mrf.mxu0
        %v475 = vadd.f32 %v378, %v474
        %476 = vmatmul.f32.gmra.mxu0 %v306
        %v477 = vpop.f32.mrf.mxu0
        %v478 = vadd.f32 %v378, %v477
        %479 = vmatmul.f32.gmra.mxu0 %v307
        %v480 = vpop.f32.mrf.mxu0
        %v481 = vadd.f32 %v378, %v480
        %482 = vmatmul.f32.gmra.mxu0 %v308
        %v483 = vpop.f32.mrf.mxu0
        %v484 = vadd.f32 %v378, %v483
        %485 = vmatmul.f32.gmra.mxu0 %v309
        %v486 = vpop.f32.mrf.mxu0
        %v487 = vadd.f32 %v378, %v486
        %488 = vmatmul.f32.gmra.mxu0 %v310
        %v489 = vpop.f32.mrf.mxu0
        %v490 = vadd.f32 %v378, %v489
        %491 = vmatmul.f32.gmra.mxu0 %v311
        %v492 = vpop.f32.mrf.mxu0
        %v493 = vadd.f32 %v378, %v492
        %494 = vmatmul.f32.gmra.mxu0 %v312
        %v495 = vpop.f32.mrf.mxu0
        %v496 = vadd.f32 %v378, %v495
        %497 = vmatmul.f32.gmra.mxu0 %v313
        %v498 = vpop.f32.mrf.mxu0
        %v499 = vadd.f32 %v378, %v498
        %500 = vmatmul.f32.gmra.mxu0 %v314
        %v501 = vpop.f32.mrf.mxu0
        %v502 = vadd.f32 %v378, %v501
        %503 = vmatmul.f32.gmra.mxu0 %v315
        %v504 = vpop.f32.mrf.mxu0
        %v505 = vadd.f32 %v378, %v504
        %506 = vmatmul.f32.gmra.mxu0 %v316
        %v507 = vpop.f32.mrf.mxu0
        %v508 = vadd.f32 %v378, %v507
        %509 = vmatmul.f32.gmra.mxu0 %v317
        %v510 = vpop.f32.mrf.mxu0
        %v511 = vadd.f32 %v378, %v510
        %512 = vmatmul.f32.gmra.mxu0 %v318
        %v513 = vpop.f32.mrf.mxu0
        %v514 = vadd.f32 %v378, %v513
        %515 = vmatmul.f32.gmra.mxu0 %v319
        %v516 = vpop.f32.mrf.mxu0
        %v517 = vadd.f32 %v378, %v516
        %518 = vmatmul.f32.gmra.mxu0 %v320
        %v519 = vpop.f32.mrf.mxu0
        %v520 = vadd.f32 %v378, %v519
        %521 = vmatmul.f32.gmra.mxu0 %v321
        %v522 = vpop.f32.mrf.mxu0
        %v523 = vadd.f32 %v378, %v522
        %524 = vmatmul.f32.gmra.mxu0 %v322
        %v525 = vpop.f32.mrf.mxu0
        %v526 = vadd.f32 %v378, %v525
        %527 = vmatmul.f32.gmra.mxu0 %v323
        %v528 = vpop.f32.mrf.mxu0
        %v529 = vadd.f32 %v378, %v528
        %530 = vmatmul.f32.gmra.mxu0 %v324
        %v531 = vpop.f32.mrf.mxu0
        %v532 = vadd.f32 %v378, %v531
        %533 = vmatmul.f32.gmra.mxu0 %v325
        %v534 = vpop.f32.mrf.mxu0
        %v535 = vadd.f32 %v378, %v534
        %536 = vmatmul.f32.gmra.mxu0 %v326
        %v537 = vpop.f32.mrf.mxu0
        %v538 = vadd.f32 %v378, %v537
        %539 = vmatmul.f32.gmra.mxu0 %v327
        %v540 = vpop.f32.mrf.mxu0
        %v541 = vadd.f32 %v378, %v540
        %542 = vmatmul.f32.gmra.mxu0 %v328
        %v543 = vpop.f32.mrf.mxu0
        %v544 = vadd.f32 %v378, %v543
        %545 = vmatmul.f32.gmra.mxu0 %v329
        %v546 = vpop.f32.mrf.mxu0
        %v547 = vadd.f32 %v378, %v546
        %548 = vmatmul.f32.gmra.mxu0 %v330
        %v549 = vpop.f32.mrf.mxu0
        %v550 = vadd.f32 %v378, %v549
        %551 = vmatmul.f32.gmra.mxu0 %v331
        %v552 = vpop.f32.mrf.mxu0
        %v553 = vadd.f32 %v378, %v552
        %554 = vmatmul.f32.gmra.mxu0 %v332
        %v555 = vpop.f32.mrf.mxu0
        %v556 = vadd.f32 %v378, %v555
        %557 = vmatmul.f32.gmra.mxu0 %v333
        %v558 = vpop.f32.mrf.mxu0
        %v559 = vadd.f32 %v378, %v558
        %560 = vmatmul.f32.gmra.mxu0 %v334
        %v561 = vpop.f32.mrf.mxu0
        %v562 = vadd.f32 %v378, %v561
        %563 = vmatmul.f32.gmra.mxu0 %v335
        %v564 = vpop.f32.mrf.mxu0
        %v565 = vadd.f32 %v378, %v564
        %566 = vmatmul.f32.gmra.mxu0 %v336
        %v567 = vpop.f32.mrf.mxu0
        %v568 = vadd.f32 %v378, %v567
        %569 = vmatmul.f32.gmra.mxu0 %v337
        %v570 = vpop.f32.mrf.mxu0
        %v571 = vadd.f32 %v378, %v570
        %572 = vmatmul.f32.gmra.mxu0 %v338
        %v573 = vpop.f32.mrf.mxu0
        %v574 = vadd.f32 %v378, %v573
        %575 = vmatmul.f32.gmra.mxu0 %v339
        %v576 = vpop.f32.mrf.mxu0
        %v577 = vadd.f32 %v378, %v576
        %578 = vmatmul.f32.gmra.mxu0 %v340
        %v579 = vpop.f32.mrf.mxu0
        %v580 = vadd.f32 %v378, %v579
        %581 = vmatmul.f32.gmra.mxu0 %v341
        %v582 = vpop.f32.mrf.mxu0
        %v583 = vadd.f32 %v378, %v582
        %584 = vmatmul.f32.gmra.mxu0 %v342
        %v585 = vpop.f32.mrf.mxu0
        %v586 = vadd.f32 %v378, %v585
        %587 = vmatmul.f32.gmra.mxu0 %v343
        %v588 = vpop.f32.mrf.mxu0
        %v589 = vadd.f32 %v378, %v588
        %590 = vdwg.mxu0
        %591 = vmatpush.msra.mxu0 %v375
        %592 = vmatpush.msra.mxu0 %v373
        %593 = vmatpush.msra.mxu0 %v371
        %594 = vmatpush.msra.mxu0 %v369
        %595 = vmatpush.msra.mxu0 %v367
        %596 = vmatpush.msra.mxu0 %v365
        %597 = vmatpush.msra.mxu0 %v363
        %598 = vmatpush.msra.mxu0 %v361
        %599 = vmatpush.msra.mxu0 %v359
        %600 = vmatpush.msra.mxu0 %v357
        %601 = vmatpush.msra.mxu0 %v355
        %602 = vmatpush.msra.mxu0 %v353
        %603 = vmatpush.msra.mxu0 %v351
        %604 = vmatpush.msra.mxu0 %v349
        %605 = vmatpush.msra.mxu0 %v347
        %606 = vmatpush.msra.mxu0 %v345
        %607 = vmatmul.f32.gmra.mxu0 %v280
        %v608 = vpop.f32.mrf.mxu0
        %v609 = vadd.f32 %v379, %v608
        %610 = vmatmul.f32.gmra.mxu0 %v281
        %v611 = vpop.f32.mrf.mxu0
        %v612 = vadd.f32 %v379, %v611
        %613 = vmatmul.f32.gmra.mxu0 %v282
        %v614 = vpop.f32.mrf.mxu0
        %v615 = vadd.f32 %v379, %v614
        %616 = vmatmul.f32.gmra.mxu0 %v283
        %v617 = vpop.f32.mrf.mxu0
        %v618 = vadd.f32 %v379, %v617
        %619 = vmatmul.f32.gmra.mxu0 %v284
        %v620 = vpop.f32.mrf.mxu0
        %v621 = vadd.f32 %v379, %v620
        %622 = vmatmul.f32.gmra.mxu0 %v285
        %v623 = vpop.f32.mrf.mxu0
        %v624 = vadd.f32 %v379, %v623
        %625 = vmatmul.f32.gmra.mxu0 %v286
        %v626 = vpop.f32.mrf.mxu0
        %v627 = vadd.f32 %v379, %v626
        %628 = vmatmul.f32.gmra.mxu0 %v287
        %v629 = vpop.f32.mrf.mxu0
        %v630 = vadd.f32 %v379, %v629
        %631 = vmatmul.f32.gmra.mxu0 %v288
        %v632 = vpop.f32.mrf.mxu0
        %v633 = vadd.f32 %v379, %v632
        %634 = vmatmul.f32.gmra.mxu0 %v289
        %v635 = vpop.f32.mrf.mxu0
        %v636 = vadd.f32 %v379, %v635
        %637 = vmatmul.f32.gmra.mxu0 %v290
        %v638 = vpop.f32.mrf.mxu0
        %v639 = vadd.f32 %v379, %v638
        %640 = vmatmul.f32.gmra.mxu0 %v291
        %v641 = vpop.f32.mrf.mxu0
        %v642 = vadd.f32 %v379, %v641
        %643 = vmatmul.f32.gmra.mxu0 %v292
        %v644 = vpop.f32.mrf.mxu0
        %v645 = vadd.f32 %v379, %v644
        %646 = vmatmul.f32.gmra.mxu0 %v293
        %v647 = vpop.f32.mrf.mxu0
        %v648 = vadd.f32 %v379, %v647
        %649 = vmatmul.f32.gmra.mxu0 %v294
        %v650 = vpop.f32.mrf.mxu0
        %v651 = vadd.f32 %v379, %v650
        %652 = vmatmul.f32.gmra.mxu0 %v295
        %v653 = vpop.f32.mrf.mxu0
        %v654 = vadd.f32 %v379, %v653
        %655 = vmatmul.f32.gmra.mxu0 %v296
        %v656 = vpop.f32.mrf.mxu0
        %v657 = vadd.f32 %v379, %v656
        %658 = vmatmul.f32.gmra.mxu0 %v297
        %v659 = vpop.f32.mrf.mxu0
        %v660 = vadd.f32 %v379, %v659
        %661 = vmatmul.f32.gmra.mxu0 %v298
        %v662 = vpop.f32.mrf.mxu0
        %v663 = vadd.f32 %v379, %v662
        %664 = vmatmul.f32.gmra.mxu0 %v299
        %v665 = vpop.f32.mrf.mxu0
        %v666 = vadd.f32 %v379, %v665
        %667 = vmatmul.f32.gmra.mxu0 %v300
        %v668 = vpop.f32.mrf.mxu0
        %v669 = vadd.f32 %v379, %v668
        %670 = vmatmul.f32.gmra.mxu0 %v301
        %v671 = vpop.f32.mrf.mxu0
        %v672 = vadd.f32 %v379, %v671
        %673 = vmatmul.f32.gmra.mxu0 %v302
        %v674 = vpop.f32.mrf.mxu0
        %v675 = vadd.f32 %v379, %v674
        %676 = vmatmul.f32.gmra.mxu0 %v303
        %v677 = vpop.f32.mrf.mxu0
        %v678 = vadd.f32 %v379, %v677
        %679 = vmatmul.f32.gmra.mxu0 %v304
        %v680 = vpop.f32.mrf.mxu0
        %v681 = vadd.f32 %v379, %v680
        %682 = vmatmul.f32.gmra.mxu0 %v305
        %v683 = vpop.f32.mrf.mxu0
        %v684 = vadd.f32 %v379, %v683
        %685 = vmatmul.f32.gmra.mxu0 %v306
        %v686 = vpop.f32.mrf.mxu0
        %v687 = vadd.f32 %v379, %v686
        %688 = vmatmul.f32.gmra.mxu0 %v307
        %v689 = vpop.f32.mrf.mxu0
        %v690 = vadd.f32 %v379, %v689
        %691 = vmatmul.f32.gmra.mxu0 %v308
        %v692 = vpop.f32.mrf.mxu0
        %v693 = vadd.f32 %v379, %v692
        %694 = vmatmul.f32.gmra.mxu0 %v309
        %v695 = vpop.f32.mrf.mxu0
        %v696 = vadd.f32 %v379, %v695
        %697 = vmatmul.f32.gmra.mxu0 %v310
        %v698 = vpop.f32.mrf.mxu0
        %v699 = vadd.f32 %v379, %v698
        %700 = vmatmul.f32.gmra.mxu0 %v311
        %v701 = vpop.f32.mrf.mxu0
        %v702 = vadd.f32 %v379, %v701
        %703 = vmatmul.f32.gmra.mxu0 %v312
        %v704 = vpop.f32.mrf.mxu0
        %v705 = vadd.f32 %v379, %v704
        %706 = vmatmul.f32.gmra.mxu0 %v313
        %v707 = vpop.f32.mrf.mxu0
        %v708 = vadd.f32 %v379, %v707
        %709 = vmatmul.f32.gmra.mxu0 %v314
        %v710 = vpop.f32.mrf.mxu0
        %v711 = vadd.f32 %v379, %v710
        %712 = vmatmul.f32.gmra.mxu0 %v315
        %v713 = vpop.f32.mrf.mxu0
        %v714 = vadd.f32 %v379, %v713
        %715 = vmatmul.f32.gmra.mxu0 %v316
        %v716 = vpop.f32.mrf.mxu0
        %v717 = vadd.f32 %v379, %v716
        %718 = vmatmul.f32.gmra.mxu0 %v317
        %v719 = vpop.f32.mrf.mxu0
        %v720 = vadd.f32 %v379, %v719
        %721 = vmatmul.f32.gmra.mxu0 %v318
        %v722 = vpop.f32.mrf.mxu0
        %v723 = vadd.f32 %v379, %v722
        %724 = vmatmul.f32.gmra.mxu0 %v319
        %v725 = vpop.f32.mrf.mxu0
        %v726 = vadd.f32 %v379, %v725
        %727 = vmatmul.f32.gmra.mxu0 %v320
        %v728 = vpop.f32.mrf.mxu0
        %v729 = vadd.f32 %v379, %v728
        %730 = vmatmul.f32.gmra.mxu0 %v321
        %v731 = vpop.f32.mrf.mxu0
        %v732 = vadd.f32 %v379, %v731
        %733 = vmatmul.f32.gmra.mxu0 %v322
        %v734 = vpop.f32.mrf.mxu0
        %v735 = vadd.f32 %v379, %v734
        %736 = vmatmul.f32.gmra.mxu0 %v323
        %v737 = vpop.f32.mrf.mxu0
        %v738 = vadd.f32 %v379, %v737
        %739 = vmatmul.f32.gmra.mxu0 %v324
        %v740 = vpop.f32.mrf.mxu0
        %v741 = vadd.f32 %v379, %v740
        %742 = vmatmul.f32.gmra.mxu0 %v325
        %v743 = vpop.f32.mrf.mxu0
        %v744 = vadd.f32 %v379, %v743
        %745 = vmatmul.f32.gmra.mxu0 %v326
        %v746 = vpop.f32.mrf.mxu0
        %v747 = vadd.f32 %v379, %v746
        %748 = vmatmul.f32.gmra.mxu0 %v327
        %v749 = vpop.f32.mrf.mxu0
        %v750 = vadd.f32 %v379, %v749
        %751 = vmatmul.f32.gmra.mxu0 %v328
        %v752 = vpop.f32.mrf.mxu0
        %v753 = vadd.f32 %v379, %v752
        %754 = vmatmul.f32.gmra.mxu0 %v329
        %v755 = vpop.f32.mrf.mxu0
        %v756 = vadd.f32 %v379, %v755
        %757 = vmatmul.f32.gmra.mxu0 %v330
        %v758 = vpop.f32.mrf.mxu0
        %v759 = vadd.f32 %v379, %v758
        %760 = vmatmul.f32.gmra.mxu0 %v331
        %v761 = vpop.f32.mrf.mxu0
        %v762 = vadd.f32 %v379, %v761
        %763 = vmatmul.f32.gmra.mxu0 %v332
        %v764 = vpop.f32.mrf.mxu0
        %v765 = vadd.f32 %v379, %v764
        %766 = vmatmul.f32.gmra.mxu0 %v333
        %v767 = vpop.f32.mrf.mxu0
        %v768 = vadd.f32 %v379, %v767
        %769 = vmatmul.f32.gmra.mxu0 %v334
        %v770 = vpop.f32.mrf.mxu0
        %v771 = vadd.f32 %v379, %v770
        %772 = vmatmul.f32.gmra.mxu0 %v335
        %v773 = vpop.f32.mrf.mxu0
        %v774 = vadd.f32 %v379, %v773
        %775 = vmatmul.f32.gmra.mxu0 %v336
        %v776 = vpop.f32.mrf.mxu0
        %v777 = vadd.f32 %v379, %v776
        %778 = vmatmul.f32.gmra.mxu0 %v337
        %v779 = vpop.f32.mrf.mxu0
        %v780 = vadd.f32 %v379, %v779
        %781 = vmatmul.f32.gmra.mxu0 %v338
        %v782 = vpop.f32.mrf.mxu0
        %v783 = vadd.f32 %v379, %v782
        %784 = vmatmul.f32.gmra.mxu0 %v339
        %v785 = vpop.f32.mrf.mxu0
        %v786 = vadd.f32 %v379, %v785
        %787 = vmatmul.f32.gmra.mxu0 %v340
        %v788 = vpop.f32.mrf.mxu0
        %v789 = vadd.f32 %v379, %v788
        %790 = vmatmul.f32.gmra.mxu0 %v341
        %v791 = vpop.f32.mrf.mxu0
        %v792 = vadd.f32 %v379, %v791
        %793 = vmatmul.f32.gmra.mxu0 %v342
        %v794 = vpop.f32.mrf.mxu0
        %v795 = vadd.f32 %v379, %v794
        %796 = vmatmul.f32.gmra.mxu0 %v343
        %v797 = vpop.f32.mrf.mxu0
        %v798 = vadd.f32 %v379, %v797
        %799 = vdwg.mxu0
        %vm800 = vcmp.ge.f32.partialorder %v400, 0.0
        %vm801 = vcmp.ge.f32.partialorder %v609, 0.0
        %vm802 = vcmp.ge.f32.partialorder %v403, 0.0
        %vm803 = vcmp.ge.f32.partialorder %v612, 0.0
        %vm804 = vcmp.ge.f32.partialorder %v406, 0.0
        %vm805 = vcmp.ge.f32.partialorder %v615, 0.0
        %vm806 = vcmp.ge.f32.partialorder %v409, 0.0
        %vm807 = vcmp.ge.f32.partialorder %v618, 0.0
        %vm808 = vcmp.ge.f32.partialorder %v412, 0.0
        %vm809 = vcmp.ge.f32.partialorder %v621, 0.0
        %vm810 = vcmp.ge.f32.partialorder %v415, 0.0
        %vm811 = vcmp.ge.f32.partialorder %v624, 0.0
        %vm812 = vcmp.ge.f32.partialorder %v418, 0.0
        %vm813 = vcmp.ge.f32.partialorder %v627, 0.0
        %vm814 = vcmp.ge.f32.partialorder %v421, 0.0
        %vm815 = vcmp.ge.f32.partialorder %v630, 0.0
        %vm816 = vcmp.ge.f32.partialorder %v424, 0.0
        %vm817 = vcmp.ge.f32.partialorder %v633, 0.0
        %vm818 = vcmp.ge.f32.partialorder %v427, 0.0
        %vm819 = vcmp.ge.f32.partialorder %v636, 0.0
        %vm820 = vcmp.ge.f32.partialorder %v430, 0.0
        %vm821 = vcmp.ge.f32.partialorder %v639, 0.0
        %vm822 = vcmp.ge.f32.partialorder %v433, 0.0
        %vm823 = vcmp.ge.f32.partialorder %v642, 0.0
        %vm824 = vcmp.ge.f32.partialorder %v436, 0.0
        %vm825 = vcmp.ge.f32.partialorder %v645, 0.0
        %vm826 = vcmp.ge.f32.partialorder %v439, 0.0
        %vm827 = vcmp.ge.f32.partialorder %v648, 0.0
        %vm828 = vcmp.ge.f32.partialorder %v442, 0.0
        %vm829 = vcmp.ge.f32.partialorder %v651, 0.0
        %vm830 = vcmp.ge.f32.partialorder %v445, 0.0
        %vm831 = vcmp.ge.f32.partialorder %v654, 0.0
        %vm832 = vcmp.ge.f32.partialorder %v448, 0.0
        %vm833 = vcmp.ge.f32.partialorder %v657, 0.0
        %vm834 = vcmp.ge.f32.partialorder %v451, 0.0
        %vm835 = vcmp.ge.f32.partialorder %v660, 0.0
        %vm836 = vcmp.ge.f32.partialorder %v454, 0.0
        %vm837 = vcmp.ge.f32.partialorder %v663, 0.0
        %vm838 = vcmp.ge.f32.partialorder %v457, 0.0
        %vm839 = vcmp.ge.f32.partialorder %v666, 0.0
        %vm840 = vcmp.ge.f32.partialorder %v460, 0.0
        %vm841 = vcmp.ge.f32.partialorder %v669, 0.0
        %vm842 = vcmp.ge.f32.partialorder %v463, 0.0
        %vm843 = vcmp.ge.f32.partialorder %v672, 0.0
        %vm844 = vcmp.ge.f32.partialorder %v466, 0.0
        %vm845 = vcmp.ge.f32.partialorder %v675, 0.0
        %vm846 = vcmp.ge.f32.partialorder %v469, 0.0
        %vm847 = vcmp.ge.f32.partialorder %v678, 0.0
        %vm848 = vcmp.ge.f32.partialorder %v472, 0.0
        %vm849 = vcmp.ge.f32.partialorder %v681, 0.0
        %vm850 = vcmp.ge.f32.partialorder %v475, 0.0
        %vm851 = vcmp.ge.f32.partialorder %v684, 0.0
        %vm852 = vcmp.ge.f32.partialorder %v478, 0.0
        %vm853 = vcmp.ge.f32.partialorder %v687, 0.0
        %vm854 = vcmp.ge.f32.partialorder %v481, 0.0
        %vm855 = vcmp.ge.f32.partialorder %v690, 0.0
        %vm856 = vcmp.ge.f32.partialorder %v484, 0.0
        %vm857 = vcmp.ge.f32.partialorder %v693, 0.0
        %vm858 = vcmp.ge.f32.partialorder %v487, 0.0
        %vm859 = vcmp.ge.f32.partialorder %v696, 0.0
        %vm860 = vcmp.ge.f32.partialorder %v490, 0.0
        %vm861 = vcmp.ge.f32.partialorder %v699, 0.0
        %vm862 = vcmp.ge.f32.partialorder %v493, 0.0
        %vm863 = vcmp.ge.f32.partialorder %v702, 0.0
        %vm864 = vcmp.ge.f32.partialorder %v496, 0.0
        %vm865 = vcmp.ge.f32.partialorder %v705, 0.0
        %vm866 = vcmp.ge.f32.partialorder %v499, 0.0
        %vm867 = vcmp.ge.f32.partialorder %v708, 0.0
        %vm868 = vcmp.ge.f32.partialorder %v502, 0.0
        %vm869 = vcmp.ge.f32.partialorder %v711, 0.0
        %vm870 = vcmp.ge.f32.partialorder %v505, 0.0
        %vm871 = vcmp.ge.f32.partialorder %v714, 0.0
        %vm872 = vcmp.ge.f32.partialorder %v508, 0.0
        %vm873 = vcmp.ge.f32.partialorder %v717, 0.0
        %vm874 = vcmp.ge.f32.partialorder %v511, 0.0
        %vm875 = vcmp.ge.f32.partialorder %v720, 0.0
        %vm876 = vcmp.ge.f32.partialorder %v514, 0.0
        %vm877 = vcmp.ge.f32.partialorder %v723, 0.0
        %vm878 = vcmp.ge.f32.partialorder %v517, 0.0
        %vm879 = vcmp.ge.f32.partialorder %v726, 0.0
        %vm880 = vcmp.ge.f32.partialorder %v520, 0.0
        %vm881 = vcmp.ge.f32.partialorder %v729, 0.0
        %vm882 = vcmp.ge.f32.partialorder %v523, 0.0
        %vm883 = vcmp.ge.f32.partialorder %v732, 0.0
        %vm884 = vcmp.ge.f32.partialorder %v526, 0.0
        %vm885 = vcmp.ge.f32.partialorder %v735, 0.0
        %vm886 = vcmp.ge.f32.partialorder %v529, 0.0
        %vm887 = vcmp.ge.f32.partialorder %v738, 0.0
        %vm888 = vcmp.ge.f32.partialorder %v532, 0.0
        %vm889 = vcmp.ge.f32.partialorder %v741, 0.0
        %vm890 = vcmp.ge.f32.partialorder %v535, 0.0
        %vm891 = vcmp.ge.f32.partialorder %v744, 0.0
        %vm892 = vcmp.ge.f32.partialorder %v538, 0.0
        %vm893 = vcmp.ge.f32.partialorder %v747, 0.0
        %vm894 = vcmp.ge.f32.partialorder %v541, 0.0
        %vm895 = vcmp.ge.f32.partialorder %v750, 0.0
        %vm896 = vcmp.ge.f32.partialorder %v544, 0.0
        %vm897 = vcmp.ge.f32.partialorder %v753, 0.0
        %vm898 = vcmp.ge.f32.partialorder %v547, 0.0
        %vm899 = vcmp.ge.f32.partialorder %v756, 0.0
        %vm900 = vcmp.ge.f32.partialorder %v550, 0.0
        %vm901 = vcmp.ge.f32.partialorder %v759, 0.0
        %vm902 = vcmp.ge.f32.partialorder %v553, 0.0
        %vm903 = vcmp.ge.f32.partialorder %v762, 0.0
        %vm904 = vcmp.ge.f32.partialorder %v556, 0.0
        %vm905 = vcmp.ge.f32.partialorder %v765, 0.0
        %vm906 = vcmp.ge.f32.partialorder %v559, 0.0
        %vm907 = vcmp.ge.f32.partialorder %v768, 0.0
        %vm908 = vcmp.ge.f32.partialorder %v562, 0.0
        %vm909 = vcmp.ge.f32.partialorder %v771, 0.0
        %vm910 = vcmp.ge.f32.partialorder %v565, 0.0
        %vm911 = vcmp.ge.f32.partialorder %v774, 0.0
        %vm912 = vcmp.ge.f32.partialorder %v568, 0.0
        %vm913 = vcmp.ge.f32.partialorder %v777, 0.0
        %vm914 = vcmp.ge.f32.partialorder %v571, 0.0
        %vm915 = vcmp.ge.f32.partialorder %v780, 0.0
        %vm916 = vcmp.ge.f32.partialorder %v574, 0.0
        %vm917 = vcmp.ge.f32.partialorder %v783, 0.0
        %vm918 = vcmp.ge.f32.partialorder %v577, 0.0
        %vm919 = vcmp.ge.f32.partialorder %v786, 0.0
        %vm920 = vcmp.ge.f32.partialorder %v580, 0.0
        %vm921 = vcmp.ge.f32.partialorder %v789, 0.0
        %vm922 = vcmp.ge.f32.partialorder %v583, 0.0
        %vm923 = vcmp.ge.f32.partialorder %v792, 0.0
        %vm924 = vcmp.ge.f32.partialorder %v586, 0.0
        %vm925 = vcmp.ge.f32.partialorder %v795, 0.0
        %vm926 = vcmp.ge.f32.partialorder %v589, 0.0
        %vm927 = vcmp.ge.f32.partialorder %v798, 0.0
        %v928 = vmul.f32 %v400, 0.01
        %v929 = vmul.f32 %v609, 0.01
        %v930 = vmul.f32 %v403, 0.01
        %v931 = vmul.f32 %v612, 0.01
        %v932 = vmul.f32 %v406, 0.01
        %v933 = vmul.f32 %v615, 0.01
        %v934 = vmul.f32 %v409, 0.01
        %v935 = vmul.f32 %v618, 0.01
        %v936 = vmul.f32 %v412, 0.01
        %v937 = vmul.f32 %v621, 0.01
        %v938 = vmul.f32 %v415, 0.01
        %v939 = vmul.f32 %v624, 0.01
        %v940 = vmul.f32 %v418, 0.01
        %v941 = vmul.f32 %v627, 0.01
        %v942 = vmul.f32 %v421, 0.01
        %v943 = vmul.f32 %v630, 0.01
        %v944 = vmul.f32 %v424, 0.01
        %v945 = vmul.f32 %v633, 0.01
        %v946 = vmul.f32 %v427, 0.01
        %v947 = vmul.f32 %v636, 0.01
        %v948 = vmul.f32 %v430, 0.01
        %v949 = vmul.f32 %v639, 0.01
        %v950 = vmul.f32 %v433, 0.01
        %v951 = vmul.f32 %v642, 0.01
        %v952 = vmul.f32 %v436, 0.01
        %v953 = vmul.f32 %v645, 0.01
        %v954 = vmul.f32 %v439, 0.01
        %v955 = vmul.f32 %v648, 0.01
        %v956 = vmul.f32 %v442, 0.01
        %v957 = vmul.f32 %v651, 0.01
        %v958 = vmul.f32 %v445, 0.01
        %v959 = vmul.f32 %v654, 0.01
        %v960 = vmul.f32 %v448, 0.01
        %v961 = vmul.f32 %v657, 0.01
        %v962 = vmul.f32 %v451, 0.01
        %v963 = vmul.f32 %v660, 0.01
        %v964 = vmul.f32 %v454, 0.01
        %v965 = vmul.f32 %v663, 0.01
        %v966 = vmul.f32 %v457, 0.01
        %v967 = vmul.f32 %v666, 0.01
        %v968 = vmul.f32 %v460, 0.01
        %v969 = vmul.f32 %v669, 0.01
        %v970 = vmul.f32 %v463, 0.01
        %v971 = vmul.f32 %v672, 0.01
        %v972 = vmul.f32 %v466, 0.01
        %v973 = vmul.f32 %v675, 0.01
        %v974 = vmul.f32 %v469, 0.01
        %v975 = vmul.f32 %v678, 0.01
        %v976 = vmul.f32 %v472, 0.01
        %v977 = vmul.f32 %v681, 0.01
        %v978 = vmul.f32 %v475, 0.01
        %v979 = vmul.f32 %v684, 0.01
        %v980 = vmul.f32 %v478, 0.01
        %v981 = vmul.f32 %v687, 0.01
        %v982 = vmul.f32 %v481, 0.01
        %v983 = vmul.f32 %v690, 0.01
        %v984 = vmul.f32 %v484, 0.01
        %v985 = vmul.f32 %v693, 0.01
        %v986 = vmul.f32 %v487, 0.01
        %v987 = vmul.f32 %v696, 0.01
        %v988 = vmul.f32 %v490, 0.01
        %v989 = vmul.f32 %v699, 0.01
        %v990 = vmul.f32 %v493, 0.01
        %v991 = vmul.f32 %v702, 0.01
        %v992 = vmul.f32 %v496, 0.01
        %v993 = vmul.f32 %v705, 0.01
        %v994 = vmul.f32 %v499, 0.01
        %v995 = vmul.f32 %v708, 0.01
        %v996 = vmul.f32 %v502, 0.01
        %v997 = vmul.f32 %v711, 0.01
        %v998 = vmul.f32 %v505, 0.01
        %v999 = vmul.f32 %v714, 0.01
        %v1000 = vmul.f32 %v508, 0.01
        %v1001 = vmul.f32 %v717, 0.01
        %v1002 = vmul.f32 %v511, 0.01
        %v1003 = vmul.f32 %v720, 0.01
        %v1004 = vmul.f32 %v514, 0.01
        %v1005 = vmul.f32 %v723, 0.01
        %v1006 = vmul.f32 %v517, 0.01
        %v1007 = vmul.f32 %v726, 0.01
        %v1008 = vmul.f32 %v520, 0.01
        %v1009 = vmul.f32 %v729, 0.01
        %v1010 = vmul.f32 %v523, 0.01
        %v1011 = vmul.f32 %v732, 0.01
        %v1012 = vmul.f32 %v526, 0.01
        %v1013 = vmul.f32 %v735, 0.01
        %v1014 = vmul.f32 %v529, 0.01
        %v1015 = vmul.f32 %v738, 0.01
        %v1016 = vmul.f32 %v532, 0.01
        %v1017 = vmul.f32 %v741, 0.01
        %v1018 = vmul.f32 %v535, 0.01
        %v1019 = vmul.f32 %v744, 0.01
        %v1020 = vmul.f32 %v538, 0.01
        %v1021 = vmul.f32 %v747, 0.01
        %v1022 = vmul.f32 %v541, 0.01
        %v1023 = vmul.f32 %v750, 0.01
        %v1024 = vmul.f32 %v544, 0.01
        %v1025 = vmul.f32 %v753, 0.01
        %v1026 = vmul.f32 %v547, 0.01
        %v1027 = vmul.f32 %v756, 0.01
        %v1028 = vmul.f32 %v550, 0.01
        %v1029 = vmul.f32 %v759, 0.01
        %v1030 = vmul.f32 %v553, 0.01
        %v1031 = vmul.f32 %v762, 0.01
        %v1032 = vmul.f32 %v556, 0.01
        %v1033 = vmul.f32 %v765, 0.01
        %v1034 = vmul.f32 %v559, 0.01
        %v1035 = vmul.f32 %v768, 0.01
        %v1036 = vmul.f32 %v562, 0.01
        %v1037 = vmul.f32 %v771, 0.01
        %v1038 = vmul.f32 %v565, 0.01
        %v1039 = vmul.f32 %v774, 0.01
        %v1040 = vmul.f32 %v568, 0.01
        %v1041 = vmul.f32 %v777, 0.01
        %v1042 = vmul.f32 %v571, 0.01
        %v1043 = vmul.f32 %v780, 0.01
        %v1044 = vmul.f32 %v574, 0.01
        %v1045 = vmul.f32 %v783, 0.01
        %v1046 = vmul.f32 %v577, 0.01
        %v1047 = vmul.f32 %v786, 0.01
        %v1048 = vmul.f32 %v580, 0.01
        %v1049 = vmul.f32 %v789, 0.01
        %v1050 = vmul.f32 %v583, 0.01
        %v1051 = vmul.f32 %v792, 0.01
        %v1052 = vmul.f32 %v586, 0.01
        %v1053 = vmul.f32 %v795, 0.01
        %v1054 = vmul.f32 %v589, 0.01
        %v1055 = vmul.f32 %v798, 0.01
        %v1056 = vsel %vm800, %v400, %v928
        %v1057 = vsel %vm801, %v609, %v929
        %v1058 = vsel %vm802, %v403, %v930
        %v1059 = vsel %vm803, %v612, %v931
        %v1060 = vsel %vm804, %v406, %v932
        %v1061 = vsel %vm805, %v615, %v933
        %v1062 = vsel %vm806, %v409, %v934
        %v1063 = vsel %vm807, %v618, %v935
        %v1064 = vsel %vm808, %v412, %v936
        %v1065 = vsel %vm809, %v621, %v937
        %v1066 = vsel %vm810, %v415, %v938
        %v1067 = vsel %vm811, %v624, %v939
        %v1068 = vsel %vm812, %v418, %v940
        %v1069 = vsel %vm813, %v627, %v941
        %v1070 = vsel %vm814, %v421, %v942
        %v1071 = vsel %vm815, %v630, %v943
        %v1072 = vsel %vm816, %v424, %v944
        %v1073 = vsel %vm817, %v633, %v945
        %v1074 = vsel %vm818, %v427, %v946
        %v1075 = vsel %vm819, %v636, %v947
        %v1076 = vsel %vm820, %v430, %v948
        %v1077 = vsel %vm821, %v639, %v949
        %v1078 = vsel %vm822, %v433, %v950
        %v1079 = vsel %vm823, %v642, %v951
        %v1080 = vsel %vm824, %v436, %v952
        %v1081 = vsel %vm825, %v645, %v953
        %v1082 = vsel %vm826, %v439, %v954
        %v1083 = vsel %vm827, %v648, %v955
        %v1084 = vsel %vm828, %v442, %v956
        %v1085 = vsel %vm829, %v651, %v957
        %v1086 = vsel %vm830, %v445, %v958
        %v1087 = vsel %vm831, %v654, %v959
        %v1088 = vsel %vm832, %v448, %v960
        %v1089 = vsel %vm833, %v657, %v961
        %v1090 = vsel %vm834, %v451, %v962
        %v1091 = vsel %vm835, %v660, %v963
        %v1092 = vsel %vm836, %v454, %v964
        %v1093 = vsel %vm837, %v663, %v965
        %v1094 = vsel %vm838, %v457, %v966
        %v1095 = vsel %vm839, %v666, %v967
        %v1096 = vsel %vm840, %v460, %v968
        %v1097 = vsel %vm841, %v669, %v969
        %v1098 = vsel %vm842, %v463, %v970
        %v1099 = vsel %vm843, %v672, %v971
        %v1100 = vsel %vm844, %v466, %v972
        %v1101 = vsel %vm845, %v675, %v973
        %v1102 = vsel %vm846, %v469, %v974
        %v1103 = vsel %vm847, %v678, %v975
        %v1104 = vsel %vm848, %v472, %v976
        %v1105 = vsel %vm849, %v681, %v977
        %v1106 = vsel %vm850, %v475, %v978
        %v1107 = vsel %vm851, %v684, %v979
        %v1108 = vsel %vm852, %v478, %v980
        %v1109 = vsel %vm853, %v687, %v981
        %v1110 = vsel %vm854, %v481, %v982
        %v1111 = vsel %vm855, %v690, %v983
        %v1112 = vsel %vm856, %v484, %v984
        %v1113 = vsel %vm857, %v693, %v985
        %v1114 = vsel %vm858, %v487, %v986
        %v1115 = vsel %vm859, %v696, %v987
        %v1116 = vsel %vm860, %v490, %v988
        %v1117 = vsel %vm861, %v699, %v989
        %v1118 = vsel %vm862, %v493, %v990
        %v1119 = vsel %vm863, %v702, %v991
        %v1120 = vsel %vm864, %v496, %v992
        %v1121 = vsel %vm865, %v705, %v993
        %v1122 = vsel %vm866, %v499, %v994
        %v1123 = vsel %vm867, %v708, %v995
        %v1124 = vsel %vm868, %v502, %v996
        %v1125 = vsel %vm869, %v711, %v997
        %v1126 = vsel %vm870, %v505, %v998
        %v1127 = vsel %vm871, %v714, %v999
        %v1128 = vsel %vm872, %v508, %v1000
        %v1129 = vsel %vm873, %v717, %v1001
        %v1130 = vsel %vm874, %v511, %v1002
        %v1131 = vsel %vm875, %v720, %v1003
        %v1132 = vsel %vm876, %v514, %v1004
        %v1133 = vsel %vm877, %v723, %v1005
        %v1134 = vsel %vm878, %v517, %v1006
        %v1135 = vsel %vm879, %v726, %v1007
        %v1136 = vsel %vm880, %v520, %v1008
        %v1137 = vsel %vm881, %v729, %v1009
        %v1138 = vsel %vm882, %v523, %v1010
        %v1139 = vsel %vm883, %v732, %v1011
        %v1140 = vsel %vm884, %v526, %v1012
        %v1141 = vsel %vm885, %v735, %v1013
        %v1142 = vsel %vm886, %v529, %v1014
        %v1143 = vsel %vm887, %v738, %v1015
        %v1144 = vsel %vm888, %v532, %v1016
        %v1145 = vsel %vm889, %v741, %v1017
        %v1146 = vsel %vm890, %v535, %v1018
        %v1147 = vsel %vm891, %v744, %v1019
        %v1148 = vsel %vm892, %v538, %v1020
        %v1149 = vsel %vm893, %v747, %v1021
        %v1150 = vsel %vm894, %v541, %v1022
        %v1151 = vsel %vm895, %v750, %v1023
        %v1152 = vsel %vm896, %v544, %v1024
        %v1153 = vsel %vm897, %v753, %v1025
        %v1154 = vsel %vm898, %v547, %v1026
        %v1155 = vsel %vm899, %v756, %v1027
        %v1156 = vsel %vm900, %v550, %v1028
        %v1157 = vsel %vm901, %v759, %v1029
        %v1158 = vsel %vm902, %v553, %v1030
        %v1159 = vsel %vm903, %v762, %v1031
        %v1160 = vsel %vm904, %v556, %v1032
        %v1161 = vsel %vm905, %v765, %v1033
        %v1162 = vsel %vm906, %v559, %v1034
        %v1163 = vsel %vm907, %v768, %v1035
        %v1164 = vsel %vm908, %v562, %v1036
        %v1165 = vsel %vm909, %v771, %v1037
        %v1166 = vsel %vm910, %v565, %v1038
        %v1167 = vsel %vm911, %v774, %v1039
        %v1168 = vsel %vm912, %v568, %v1040
        %v1169 = vsel %vm913, %v777, %v1041
        %v1170 = vsel %vm914, %v571, %v1042
        %v1171 = vsel %vm915, %v780, %v1043
        %v1172 = vsel %vm916, %v574, %v1044
        %v1173 = vsel %vm917, %v783, %v1045
        %v1174 = vsel %vm918, %v577, %v1046
        %v1175 = vsel %vm919, %v786, %v1047
        %v1176 = vsel %vm920, %v580, %v1048
        %v1177 = vsel %vm921, %v789, %v1049
        %v1178 = vsel %vm922, %v583, %v1050
        %v1179 = vsel %vm923, %v792, %v1051
        %v1180 = vsel %vm924, %v586, %v1052
        %v1181 = vsel %vm925, %v795, %v1053
        %v1182 = vsel %vm926, %v589, %v1054
        %v1183 = vsel %vm927, %v798, %v1055
        %v1184 = vld [vmem:[#allocation7] sm:$0xff]
        %v1185 = vld [vmem:[#allocation7 + $0x8] sm:$0xff]
        %v1186 = vld [vmem:[#allocation7 + $0x10] sm:$0xff]
        %v1187 = vld [vmem:[#allocation7 + $0x18] sm:$0xff]
        %v1188 = vld [vmem:[#allocation7 + $0x20] sm:$0xff]
        %v1189 = vld [vmem:[#allocation7 + $0x28] sm:$0xff]
        %v1190 = vld [vmem:[#allocation7 + $0x30] sm:$0xff]
        %v1191 = vld [vmem:[#allocation7 + $0x38] sm:$0xff]
        %v1192 = vld [vmem:[#allocation7 + $0x40] sm:$0xff]
        %v1193 = vld [vmem:[#allocation7 + $0x48] sm:$0xff]
        %v1194 = vld [vmem:[#allocation7 + $0x50] sm:$0xff]
        %v1195 = vld [vmem:[#allocation7 + $0x58] sm:$0xff]
        %v1196 = vld [vmem:[#allocation7 + $0x60] sm:$0xff]
        %v1197 = vld [vmem:[#allocation7 + $0x68] sm:$0xff]
        %v1198 = vld [vmem:[#allocation7 + $0x70] sm:$0xff]
        %v1199 = vld [vmem:[#allocation7 + $0x78] sm:$0xff]
        %v1200 = vld [vmem:[#allocation7 + $0x80] sm:$0xff]
        %v1201 = vld [vmem:[#allocation7 + $0x88] sm:$0xff]
        %v1202 = vld [vmem:[#allocation7 + $0x90] sm:$0xff]
        %v1203 = vld [vmem:[#allocation7 + $0x98] sm:$0xff]
        %v1204 = vld [vmem:[#allocation7 + $0xa0] sm:$0xff]
        %v1205 = vld [vmem:[#allocation7 + $0xa8] sm:$0xff]
        %v1206 = vld [vmem:[#allocation7 + $0xb0] sm:$0xff]
        %v1207 = vld [vmem:[#allocation7 + $0xb8] sm:$0xff]
        %v1208 = vld [vmem:[#allocation7 + $0xc0] sm:$0xff]
        %v1209 = vld [vmem:[#allocation7 + $0xc8] sm:$0xff]
        %v1210 = vld [vmem:[#allocation7 + $0xd0] sm:$0xff]
        %v1211 = vld [vmem:[#allocation7 + $0xd8] sm:$0xff]
        %v1212 = vld [vmem:[#allocation7 + $0xe0] sm:$0xff]
        %v1213 = vld [vmem:[#allocation7 + $0xe8] sm:$0xff]
        %v1214 = vld [vmem:[#allocation7 + $0xf0] sm:$0xff]
        %v1215 = vld [vmem:[#allocation7 + $0xf8] sm:$0xff]
        %v1216 = vld [vmem:[%s4] sm:$0x1]
        %v1218 = vperm.slane %v1216, 0
        %1220 = vmatpush.msra.mxu0 %v1199
        %1221 = vmatpush.msra.mxu0 %v1198
        %1222 = vmatpush.msra.mxu0 %v1197
        %1223 = vmatpush.msra.mxu0 %v1196
        %1224 = vmatpush.msra.mxu0 %v1195
        %1225 = vmatpush.msra.mxu0 %v1194
        %1226 = vmatpush.msra.mxu0 %v1193
        %1227 = vmatpush.msra.mxu0 %v1192
        %1228 = vmatpush.msra.mxu0 %v1191
        %1229 = vmatpush.msra.mxu0 %v1190
        %1230 = vmatpush.msra.mxu0 %v1189
        %1231 = vmatpush.msra.mxu0 %v1188
        %1232 = vmatpush.msra.mxu0 %v1187
        %1233 = vmatpush.msra.mxu0 %v1186
        %1234 = vmatpush.msra.mxu0 %v1185
        %1235 = vmatpush.msra.mxu0 %v1184
        %1236 = vmatmul.f32.gmra.mxu0 %v1056
        %v1237 = vpop.f32.mrf.mxu0
        %v1238 = vadd.f32 %v1218, %v1237
        %1239 = vmatmul.f32.gmra.mxu0 %v1058
        %v1240 = vpop.f32.mrf.mxu0
        %v1241 = vadd.f32 %v1218, %v1240
        %1242 = vmatmul.f32.gmra.mxu0 %v1060
        %v1243 = vpop.f32.mrf.mxu0
        %v1244 = vadd.f32 %v1218, %v1243
        %1245 = vmatmul.f32.gmra.mxu0 %v1062
        %v1246 = vpop.f32.mrf.mxu0
        %v1247 = vadd.f32 %v1218, %v1246
        %1248 = vmatmul.f32.gmra.mxu0 %v1064
        %v1249 = vpop.f32.mrf.mxu0
        %v1250 = vadd.f32 %v1218, %v1249
        %1251 = vmatmul.f32.gmra.mxu0 %v1066
        %v1252 = vpop.f32.mrf.mxu0
        %v1253 = vadd.f32 %v1218, %v1252
        %1254 = vmatmul.f32.gmra.mxu0 %v1068
        %v1255 = vpop.f32.mrf.mxu0
        %v1256 = vadd.f32 %v1218, %v1255
        %1257 = vmatmul.f32.gmra.mxu0 %v1070
        %v1258 = vpop.f32.mrf.mxu0
        %v1259 = vadd.f32 %v1218, %v1258
        %1260 = vmatmul.f32.gmra.mxu0 %v1072
        %v1261 = vpop.f32.mrf.mxu0
        %v1262 = vadd.f32 %v1218, %v1261
        %1263 = vmatmul.f32.gmra.mxu0 %v1074
        %v1264 = vpop.f32.mrf.mxu0
        %v1265 = vadd.f32 %v1218, %v1264
        %1266 = vmatmul.f32.gmra.mxu0 %v1076
        %v1267 = vpop.f32.mrf.mxu0
        %v1268 = vadd.f32 %v1218, %v1267
        %1269 = vmatmul.f32.gmra.mxu0 %v1078
        %v1270 = vpop.f32.mrf.mxu0
        %v1271 = vadd.f32 %v1218, %v1270
        %1272 = vmatmul.f32.gmra.mxu0 %v1080
        %v1273 = vpop.f32.mrf.mxu0
        %v1274 = vadd.f32 %v1218, %v1273
        %1275 = vmatmul.f32.gmra.mxu0 %v1082
        %v1276 = vpop.f32.mrf.mxu0
        %v1277 = vadd.f32 %v1218, %v1276
        %1278 = vmatmul.f32.gmra.mxu0 %v1084
        %v1279 = vpop.f32.mrf.mxu0
        %v1280 = vadd.f32 %v1218, %v1279
        %1281 = vmatmul.f32.gmra.mxu0 %v1086
        %v1282 = vpop.f32.mrf.mxu0
        %v1283 = vadd.f32 %v1218, %v1282
        %1284 = vmatmul.f32.gmra.mxu0 %v1088
        %v1285 = vpop.f32.mrf.mxu0
        %v1286 = vadd.f32 %v1218, %v1285
        %1287 = vmatmul.f32.gmra.mxu0 %v1090
        %v1288 = vpop.f32.mrf.mxu0
        %v1289 = vadd.f32 %v1218, %v1288
        %1290 = vmatmul.f32.gmra.mxu0 %v1092
        %v1291 = vpop.f32.mrf.mxu0
        %v1292 = vadd.f32 %v1218, %v1291
        %1293 = vmatmul.f32.gmra.mxu0 %v1094
        %v1294 = vpop.f32.mrf.mxu0
        %v1295 = vadd.f32 %v1218, %v1294
        %1296 = vmatmul.f32.gmra.mxu0 %v1096
        %v1297 = vpop.f32.mrf.mxu0
        %v1298 = vadd.f32 %v1218, %v1297
        %1299 = vmatmul.f32.gmra.mxu0 %v1098
        %v1300 = vpop.f32.mrf.mxu0
        %v1301 = vadd.f32 %v1218, %v1300
        %1302 = vmatmul.f32.gmra.mxu0 %v1100
        %v1303 = vpop.f32.mrf.mxu0
        %v1304 = vadd.f32 %v1218, %v1303
        %1305 = vmatmul.f32.gmra.mxu0 %v1102
        %v1306 = vpop.f32.mrf.mxu0
        %v1307 = vadd.f32 %v1218, %v1306
        %1308 = vmatmul.f32.gmra.mxu0 %v1104
        %v1309 = vpop.f32.mrf.mxu0
        %v1310 = vadd.f32 %v1218, %v1309
        %1311 = vmatmul.f32.gmra.mxu0 %v1106
        %v1312 = vpop.f32.mrf.mxu0
        %v1313 = vadd.f32 %v1218, %v1312
        %1314 = vmatmul.f32.gmra.mxu0 %v1108
        %v1315 = vpop.f32.mrf.mxu0
        %v1316 = vadd.f32 %v1218, %v1315
        %1317 = vmatmul.f32.gmra.mxu0 %v1110
        %v1318 = vpop.f32.mrf.mxu0
        %v1319 = vadd.f32 %v1218, %v1318
        %1320 = vmatmul.f32.gmra.mxu0 %v1112
        %v1321 = vpop.f32.mrf.mxu0
        %v1322 = vadd.f32 %v1218, %v1321
        %1323 = vmatmul.f32.gmra.mxu0 %v1114
        %v1324 = vpop.f32.mrf.mxu0
        %v1325 = vadd.f32 %v1218, %v1324
        %1326 = vmatmul.f32.gmra.mxu0 %v1116
        %v1327 = vpop.f32.mrf.mxu0
        %v1328 = vadd.f32 %v1218, %v1327
        %1329 = vmatmul.f32.gmra.mxu0 %v1118
        %v1330 = vpop.f32.mrf.mxu0
        %v1331 = vadd.f32 %v1218, %v1330
        %1332 = vmatmul.f32.gmra.mxu0 %v1120
        %v1333 = vpop.f32.mrf.mxu0
        %v1334 = vadd.f32 %v1218, %v1333
        %1335 = vmatmul.f32.gmra.mxu0 %v1122
        %v1336 = vpop.f32.mrf.mxu0
        %v1337 = vadd.f32 %v1218, %v1336
        %1338 = vmatmul.f32.gmra.mxu0 %v1124
        %v1339 = vpop.f32.mrf.mxu0
        %v1340 = vadd.f32 %v1218, %v1339
        %1341 = vmatmul.f32.gmra.mxu0 %v1126
        %v1342 = vpop.f32.mrf.mxu0
        %v1343 = vadd.f32 %v1218, %v1342
        %1344 = vmatmul.f32.gmra.mxu0 %v1128
        %v1345 = vpop.f32.mrf.mxu0
        %v1346 = vadd.f32 %v1218, %v1345
        %1347 = vmatmul.f32.gmra.mxu0 %v1130
        %v1348 = vpop.f32.mrf.mxu0
        %v1349 = vadd.f32 %v1218, %v1348
        %1350 = vmatmul.f32.gmra.mxu0 %v1132
        %v1351 = vpop.f32.mrf.mxu0
        %v1352 = vadd.f32 %v1218, %v1351
        %1353 = vmatmul.f32.gmra.mxu0 %v1134
        %v1354 = vpop.f32.mrf.mxu0
        %v1355 = vadd.f32 %v1218, %v1354
        %1356 = vmatmul.f32.gmra.mxu0 %v1136
        %v1357 = vpop.f32.mrf.mxu0
        %v1358 = vadd.f32 %v1218, %v1357
        %1359 = vmatmul.f32.gmra.mxu0 %v1138
        %v1360 = vpop.f32.mrf.mxu0
        %v1361 = vadd.f32 %v1218, %v1360
        %1362 = vmatmul.f32.gmra.mxu0 %v1140
        %v1363 = vpop.f32.mrf.mxu0
        %v1364 = vadd.f32 %v1218, %v1363
        %1365 = vmatmul.f32.gmra.mxu0 %v1142
        %v1366 = vpop.f32.mrf.mxu0
        %v1367 = vadd.f32 %v1218, %v1366
        %1368 = vmatmul.f32.gmra.mxu0 %v1144
        %v1369 = vpop.f32.mrf.mxu0
        %v1370 = vadd.f32 %v1218, %v1369
        %1371 = vmatmul.f32.gmra.mxu0 %v1146
        %v1372 = vpop.f32.mrf.mxu0
        %v1373 = vadd.f32 %v1218, %v1372
        %1374 = vmatmul.f32.gmra.mxu0 %v1148
        %v1375 = vpop.f32.mrf.mxu0
        %v1376 = vadd.f32 %v1218, %v1375
        %1377 = vmatmul.f32.gmra.mxu0 %v1150
        %v1378 = vpop.f32.mrf.mxu0
        %v1379 = vadd.f32 %v1218, %v1378
        %1380 = vmatmul.f32.gmra.mxu0 %v1152
        %v1381 = vpop.f32.mrf.mxu0
        %v1382 = vadd.f32 %v1218, %v1381
        %1383 = vmatmul.f32.gmra.mxu0 %v1154
        %v1384 = vpop.f32.mrf.mxu0
        %v1385 = vadd.f32 %v1218, %v1384
        %1386 = vmatmul.f32.gmra.mxu0 %v1156
        %v1387 = vpop.f32.mrf.mxu0
        %v1388 = vadd.f32 %v1218, %v1387
        %1389 = vmatmul.f32.gmra.mxu0 %v1158
        %v1390 = vpop.f32.mrf.mxu0
        %v1391 = vadd.f32 %v1218, %v1390
        %1392 = vmatmul.f32.gmra.mxu0 %v1160
        %v1393 = vpop.f32.mrf.mxu0
        %v1394 = vadd.f32 %v1218, %v1393
        %1395 = vmatmul.f32.gmra.mxu0 %v1162
        %v1396 = vpop.f32.mrf.mxu0
        %v1397 = vadd.f32 %v1218, %v1396
        %1398 = vmatmul.f32.gmra.mxu0 %v1164
        %v1399 = vpop.f32.mrf.mxu0
        %v1400 = vadd.f32 %v1218, %v1399
        %1401 = vmatmul.f32.gmra.mxu0 %v1166
        %v1402 = vpop.f32.mrf.mxu0
        %v1403 = vadd.f32 %v1218, %v1402
        %1404 = vmatmul.f32.gmra.mxu0 %v1168
        %v1405 = vpop.f32.mrf.mxu0
        %v1406 = vadd.f32 %v1218, %v1405
        %1407 = vmatmul.f32.gmra.mxu0 %v1170
        %v1408 = vpop.f32.mrf.mxu0
        %v1409 = vadd.f32 %v1218, %v1408
        %1410 = vmatmul.f32.gmra.mxu0 %v1172
        %v1411 = vpop.f32.mrf.mxu0
        %v1412 = vadd.f32 %v1218, %v1411
        %1413 = vmatmul.f32.gmra.mxu0 %v1174
        %v1414 = vpop.f32.mrf.mxu0
        %v1415 = vadd.f32 %v1218, %v1414
        %1416 = vmatmul.f32.gmra.mxu0 %v1176
        %v1417 = vpop.f32.mrf.mxu0
        %v1418 = vadd.f32 %v1218, %v1417
        %1419 = vmatmul.f32.gmra.mxu0 %v1178
        %v1420 = vpop.f32.mrf.mxu0
        %v1421 = vadd.f32 %v1218, %v1420
        %1422 = vmatmul.f32.gmra.mxu0 %v1180
        %v1423 = vpop.f32.mrf.mxu0
        %v1424 = vadd.f32 %v1218, %v1423
        %1425 = vmatmul.f32.gmra.mxu0 %v1182
        %v1426 = vpop.f32.mrf.mxu0
        %v1427 = vadd.f32 %v1218, %v1426
        %1428 = vdwg.mxu0
        %1429 = vmatpush.msra.mxu0 %v1215
        %1430 = vmatpush.msra.mxu0 %v1214
        %1431 = vmatpush.msra.mxu0 %v1213
        %1432 = vmatpush.msra.mxu0 %v1212
        %1433 = vmatpush.msra.mxu0 %v1211
        %1434 = vmatpush.msra.mxu0 %v1210
        %1435 = vmatpush.msra.mxu0 %v1209
        %1436 = vmatpush.msra.mxu0 %v1208
        %1437 = vmatpush.msra.mxu0 %v1207
        %1438 = vmatpush.msra.mxu0 %v1206
        %1439 = vmatpush.msra.mxu0 %v1205
        %1440 = vmatpush.msra.mxu0 %v1204
        %1441 = vmatpush.msra.mxu0 %v1203
        %1442 = vmatpush.msra.mxu0 %v1202
        %1443 = vmatpush.msra.mxu0 %v1201
        %1444 = vmatpush.msra.mxu0 %v1200
        %1445 = vmatmul.f32.gmra.mxu0 %v1057
        %v1446 = vpop.f32.mrf.mxu0
        %v1447 = vadd.f32 %v1238, %v1446
        %1448 = vmatmul.f32.gmra.mxu0 %v1059
        %v1449 = vpop.f32.mrf.mxu0
        %v1450 = vadd.f32 %v1241, %v1449
        %1451 = vmatmul.f32.gmra.mxu0 %v1061
        %v1452 = vpop.f32.mrf.mxu0
        %v1453 = vadd.f32 %v1244, %v1452
        %1454 = vmatmul.f32.gmra.mxu0 %v1063
        %v1455 = vpop.f32.mrf.mxu0
        %v1456 = vadd.f32 %v1247, %v1455
        %1457 = vmatmul.f32.gmra.mxu0 %v1065
        %v1458 = vpop.f32.mrf.mxu0
        %v1459 = vadd.f32 %v1250, %v1458
        %1460 = vmatmul.f32.gmra.mxu0 %v1067
        %v1461 = vpop.f32.mrf.mxu0
        %v1462 = vadd.f32 %v1253, %v1461
        %1463 = vmatmul.f32.gmra.mxu0 %v1069
        %v1464 = vpop.f32.mrf.mxu0
        %v1465 = vadd.f32 %v1256, %v1464
        %1466 = vmatmul.f32.gmra.mxu0 %v1071
        %v1467 = vpop.f32.mrf.mxu0
        %v1468 = vadd.f32 %v1259, %v1467
        %1469 = vmatmul.f32.gmra.mxu0 %v1073
        %v1470 = vpop.f32.mrf.mxu0
        %v1471 = vadd.f32 %v1262, %v1470
        %1472 = vmatmul.f32.gmra.mxu0 %v1075
        %v1473 = vpop.f32.mrf.mxu0
        %v1474 = vadd.f32 %v1265, %v1473
        %1475 = vmatmul.f32.gmra.mxu0 %v1077
        %v1476 = vpop.f32.mrf.mxu0
        %v1477 = vadd.f32 %v1268, %v1476
        %1478 = vmatmul.f32.gmra.mxu0 %v1079
        %v1479 = vpop.f32.mrf.mxu0
        %v1480 = vadd.f32 %v1271, %v1479
        %1481 = vmatmul.f32.gmra.mxu0 %v1081
        %v1482 = vpop.f32.mrf.mxu0
        %v1483 = vadd.f32 %v1274, %v1482
        %1484 = vmatmul.f32.gmra.mxu0 %v1083
        %v1485 = vpop.f32.mrf.mxu0
        %v1486 = vadd.f32 %v1277, %v1485
        %1487 = vmatmul.f32.gmra.mxu0 %v1085
        %v1488 = vpop.f32.mrf.mxu0
        %v1489 = vadd.f32 %v1280, %v1488
        %1490 = vmatmul.f32.gmra.mxu0 %v1087
        %v1491 = vpop.f32.mrf.mxu0
        %v1492 = vadd.f32 %v1283, %v1491
        %1493 = vmatmul.f32.gmra.mxu0 %v1089
        %v1494 = vpop.f32.mrf.mxu0
        %v1495 = vadd.f32 %v1286, %v1494
        %1496 = vmatmul.f32.gmra.mxu0 %v1091
        %v1497 = vpop.f32.mrf.mxu0
        %v1498 = vadd.f32 %v1289, %v1497
        %1499 = vmatmul.f32.gmra.mxu0 %v1093
        %v1500 = vpop.f32.mrf.mxu0
        %v1501 = vadd.f32 %v1292, %v1500
        %1502 = vmatmul.f32.gmra.mxu0 %v1095
        %v1503 = vpop.f32.mrf.mxu0
        %v1504 = vadd.f32 %v1295, %v1503
        %1505 = vmatmul.f32.gmra.mxu0 %v1097
        %v1506 = vpop.f32.mrf.mxu0
        %v1507 = vadd.f32 %v1298, %v1506
        %1508 = vmatmul.f32.gmra.mxu0 %v1099
        %v1509 = vpop.f32.mrf.mxu0
        %v1510 = vadd.f32 %v1301, %v1509
        %1511 = vmatmul.f32.gmra.mxu0 %v1101
        %v1512 = vpop.f32.mrf.mxu0
        %v1513 = vadd.f32 %v1304, %v1512
        %1514 = vmatmul.f32.gmra.mxu0 %v1103
        %v1515 = vpop.f32.mrf.mxu0
        %v1516 = vadd.f32 %v1307, %v1515
        %1517 = vmatmul.f32.gmra.mxu0 %v1105
        %v1518 = vpop.f32.mrf.mxu0
        %v1519 = vadd.f32 %v1310, %v1518
        %1520 = vmatmul.f32.gmra.mxu0 %v1107
        %v1521 = vpop.f32.mrf.mxu0
        %v1522 = vadd.f32 %v1313, %v1521
        %1523 = vmatmul.f32.gmra.mxu0 %v1109
        %v1524 = vpop.f32.mrf.mxu0
        %v1525 = vadd.f32 %v1316, %v1524
        %1526 = vmatmul.f32.gmra.mxu0 %v1111
        %v1527 = vpop.f32.mrf.mxu0
        %v1528 = vadd.f32 %v1319, %v1527
        %1529 = vmatmul.f32.gmra.mxu0 %v1113
        %v1530 = vpop.f32.mrf.mxu0
        %v1531 = vadd.f32 %v1322, %v1530
        %1532 = vmatmul.f32.gmra.mxu0 %v1115
        %v1533 = vpop.f32.mrf.mxu0
        %v1534 = vadd.f32 %v1325, %v1533
        %1535 = vmatmul.f32.gmra.mxu0 %v1117
        %v1536 = vpop.f32.mrf.mxu0
        %v1537 = vadd.f32 %v1328, %v1536
        %1538 = vmatmul.f32.gmra.mxu0 %v1119
        %v1539 = vpop.f32.mrf.mxu0
        %v1540 = vadd.f32 %v1331, %v1539
        %1541 = vmatmul.f32.gmra.mxu0 %v1121
        %v1542 = vpop.f32.mrf.mxu0
        %v1543 = vadd.f32 %v1334, %v1542
        %1544 = vmatmul.f32.gmra.mxu0 %v1123
        %v1545 = vpop.f32.mrf.mxu0
        %v1546 = vadd.f32 %v1337, %v1545
        %1547 = vmatmul.f32.gmra.mxu0 %v1125
        %v1548 = vpop.f32.mrf.mxu0
        %v1549 = vadd.f32 %v1340, %v1548
        %1550 = vmatmul.f32.gmra.mxu0 %v1127
        %v1551 = vpop.f32.mrf.mxu0
        %v1552 = vadd.f32 %v1343, %v1551
        %1553 = vmatmul.f32.gmra.mxu0 %v1129
        %v1554 = vpop.f32.mrf.mxu0
        %v1555 = vadd.f32 %v1346, %v1554
        %1556 = vmatmul.f32.gmra.mxu0 %v1131
        %v1557 = vpop.f32.mrf.mxu0
        %v1558 = vadd.f32 %v1349, %v1557
        %1559 = vmatmul.f32.gmra.mxu0 %v1133
        %v1560 = vpop.f32.mrf.mxu0
        %v1561 = vadd.f32 %v1352, %v1560
        %1562 = vmatmul.f32.gmra.mxu0 %v1135
        %v1563 = vpop.f32.mrf.mxu0
        %v1564 = vadd.f32 %v1355, %v1563
        %1565 = vmatmul.f32.gmra.mxu0 %v1137
        %v1566 = vpop.f32.mrf.mxu0
        %v1567 = vadd.f32 %v1358, %v1566
        %1568 = vmatmul.f32.gmra.mxu0 %v1139
        %v1569 = vpop.f32.mrf.mxu0
        %v1570 = vadd.f32 %v1361, %v1569
        %1571 = vmatmul.f32.gmra.mxu0 %v1141
        %v1572 = vpop.f32.mrf.mxu0
        %v1573 = vadd.f32 %v1364, %v1572
        %1574 = vmatmul.f32.gmra.mxu0 %v1143
        %v1575 = vpop.f32.mrf.mxu0
        %v1576 = vadd.f32 %v1367, %v1575
        %1577 = vmatmul.f32.gmra.mxu0 %v1145
        %v1578 = vpop.f32.mrf.mxu0
        %v1579 = vadd.f32 %v1370, %v1578
        %1580 = vmatmul.f32.gmra.mxu0 %v1147
        %v1581 = vpop.f32.mrf.mxu0
        %v1582 = vadd.f32 %v1373, %v1581
        %1583 = vmatmul.f32.gmra.mxu0 %v1149
        %v1584 = vpop.f32.mrf.mxu0
        %v1585 = vadd.f32 %v1376, %v1584
        %1586 = vmatmul.f32.gmra.mxu0 %v1151
        %v1587 = vpop.f32.mrf.mxu0
        %v1588 = vadd.f32 %v1379, %v1587
        %1589 = vmatmul.f32.gmra.mxu0 %v1153
        %v1590 = vpop.f32.mrf.mxu0
        %v1591 = vadd.f32 %v1382, %v1590
        %1592 = vmatmul.f32.gmra.mxu0 %v1155
        %v1593 = vpop.f32.mrf.mxu0
        %v1594 = vadd.f32 %v1385, %v1593
        %1595 = vmatmul.f32.gmra.mxu0 %v1157
        %v1596 = vpop.f32.mrf.mxu0
        %v1597 = vadd.f32 %v1388, %v1596
        %1598 = vmatmul.f32.gmra.mxu0 %v1159
        %v1599 = vpop.f32.mrf.mxu0
        %v1600 = vadd.f32 %v1391, %v1599
        %1601 = vmatmul.f32.gmra.mxu0 %v1161
        %v1602 = vpop.f32.mrf.mxu0
        %v1603 = vadd.f32 %v1394, %v1602
        %1604 = vmatmul.f32.gmra.mxu0 %v1163
        %v1605 = vpop.f32.mrf.mxu0
        %v1606 = vadd.f32 %v1397, %v1605
        %1607 = vmatmul.f32.gmra.mxu0 %v1165
        %v1608 = vpop.f32.mrf.mxu0
        %v1609 = vadd.f32 %v1400, %v1608
        %1610 = vmatmul.f32.gmra.mxu0 %v1167
        %v1611 = vpop.f32.mrf.mxu0
        %v1612 = vadd.f32 %v1403, %v1611
        %1613 = vmatmul.f32.gmra.mxu0 %v1169
        %v1614 = vpop.f32.mrf.mxu0
        %v1615 = vadd.f32 %v1406, %v1614
        %1616 = vmatmul.f32.gmra.mxu0 %v1171
        %v1617 = vpop.f32.mrf.mxu0
        %v1618 = vadd.f32 %v1409, %v1617
        %1619 = vmatmul.f32.gmra.mxu0 %v1173
        %v1620 = vpop.f32.mrf.mxu0
        %v1621 = vadd.f32 %v1412, %v1620
        %1622 = vmatmul.f32.gmra.mxu0 %v1175
        %v1623 = vpop.f32.mrf.mxu0
        %v1624 = vadd.f32 %v1415, %v1623
        %1625 = vmatmul.f32.gmra.mxu0 %v1177
        %v1626 = vpop.f32.mrf.mxu0
        %v1627 = vadd.f32 %v1418, %v1626
        %1628 = vmatmul.f32.gmra.mxu0 %v1179
        %v1629 = vpop.f32.mrf.mxu0
        %v1630 = vadd.f32 %v1421, %v1629
        %1631 = vmatmul.f32.gmra.mxu0 %v1181
        %v1632 = vpop.f32.mrf.mxu0
        %v1633 = vadd.f32 %v1424, %v1632
        %1634 = vmatmul.f32.gmra.mxu0 %v1183
        %v1635 = vpop.f32.mrf.mxu0
        %v1636 = vadd.f32 %v1427, %v1635
        %1637 = vdwg.mxu0
        %1638 = vst [vmem:[%s277] sm:$0xff] %v1447
        %1639 = vst [vmem:[%s277 + $0x8] sm:$0xff] %v1450
        %1640 = vst [vmem:[%s277 + $0x10] sm:$0xff] %v1453
        %1641 = vst [vmem:[%s277 + $0x18] sm:$0xff] %v1456
        %1642 = vst [vmem:[%s277 + $0x20] sm:$0xff] %v1459
        %1643 = vst [vmem:[%s277 + $0x28] sm:$0xff] %v1462
        %1644 = vst [vmem:[%s277 + $0x30] sm:$0xff] %v1465
        %1645 = vst [vmem:[%s277 + $0x38] sm:$0xff] %v1468
        %1646 = vst [vmem:[%s277 + $0x40] sm:$0xff] %v1471
        %1647 = vst [vmem:[%s277 + $0x48] sm:$0xff] %v1474
        %1648 = vst [vmem:[%s277 + $0x50] sm:$0xff] %v1477
        %1649 = vst [vmem:[%s277 + $0x58] sm:$0xff] %v1480
        %1650 = vst [vmem:[%s277 + $0x60] sm:$0xff] %v1483
        %1651 = vst [vmem:[%s277 + $0x68] sm:$0xff] %v1486
        %1652 = vst [vmem:[%s277 + $0x70] sm:$0xff] %v1489
        %1653 = vst [vmem:[%s277 + $0x78] sm:$0xff] %v1492
        %1654 = vst [vmem:[%s277 + $0x80] sm:$0xff] %v1495
        %1655 = vst [vmem:[%s277 + $0x88] sm:$0xff] %v1498
        %1656 = vst [vmem:[%s277 + $0x90] sm:$0xff] %v1501
        %1657 = vst [vmem:[%s277 + $0x98] sm:$0xff] %v1504
        %1658 = vst [vmem:[%s277 + $0xa0] sm:$0xff] %v1507
        %1659 = vst [vmem:[%s277 + $0xa8] sm:$0xff] %v1510
        %1660 = vst [vmem:[%s277 + $0xb0] sm:$0xff] %v1513
        %1661 = vst [vmem:[%s277 + $0xb8] sm:$0xff] %v1516
        %1662 = vst [vmem:[%s277 + $0xc0] sm:$0xff] %v1519
        %1663 = vst [vmem:[%s277 + $0xc8] sm:$0xff] %v1522
        %1664 = vst [vmem:[%s277 + $0xd0] sm:$0xff] %v1525
        %1665 = vst [vmem:[%s277 + $0xd8] sm:$0xff] %v1528
        %1666 = vst [vmem:[%s277 + $0xe0] sm:$0xff] %v1531
        %1667 = vst [vmem:[%s277 + $0xe8] sm:$0xff] %v1534
        %1668 = vst [vmem:[%s277 + $0xf0] sm:$0xff] %v1537
        %1669 = vst [vmem:[%s277 + $0xf8] sm:$0xff] %v1540
        %1670 = vst [vmem:[%s277 + $0x100] sm:$0xff] %v1543
        %1671 = vst [vmem:[%s277 + $0x108] sm:$0xff] %v1546
        %1672 = vst [vmem:[%s277 + $0x110] sm:$0xff] %v1549
        %1673 = vst [vmem:[%s277 + $0x118] sm:$0xff] %v1552
        %1674 = vst [vmem:[%s277 + $0x120] sm:$0xff] %v1555
        %1675 = vst [vmem:[%s277 + $0x128] sm:$0xff] %v1558
        %1676 = vst [vmem:[%s277 + $0x130] sm:$0xff] %v1561
        %1677 = vst [vmem:[%s277 + $0x138] sm:$0xff] %v1564
        %1678 = vst [vmem:[%s277 + $0x140] sm:$0xff] %v1567
        %1679 = vst [vmem:[%s277 + $0x148] sm:$0xff] %v1570
        %1680 = vst [vmem:[%s277 + $0x150] sm:$0xff] %v1573
        %1681 = vst [vmem:[%s277 + $0x158] sm:$0xff] %v1576
        %1682 = vst [vmem:[%s277 + $0x160] sm:$0xff] %v1579
        %1683 = vst [vmem:[%s277 + $0x168] sm:$0xff] %v1582
        %1684 = vst [vmem:[%s277 + $0x170] sm:$0xff] %v1585
        %1685 = vst [vmem:[%s277 + $0x178] sm:$0xff] %v1588
        %1686 = vst [vmem:[%s277 + $0x180] sm:$0xff] %v1591
        %1687 = vst [vmem:[%s277 + $0x188] sm:$0xff] %v1594
        %1688 = vst [vmem:[%s277 + $0x190] sm:$0xff] %v1597
        %1689 = vst [vmem:[%s277 + $0x198] sm:$0xff] %v1600
        %1690 = vst [vmem:[%s277 + $0x1a0] sm:$0xff] %v1603
        %1691 = vst [vmem:[%s277 + $0x1a8] sm:$0xff] %v1606
        %1692 = vst [vmem:[%s277 + $0x1b0] sm:$0xff] %v1609
        %1693 = vst [vmem:[%s277 + $0x1b8] sm:$0xff] %v1612
        %1694 = vst [vmem:[%s277 + $0x1c0] sm:$0xff] %v1615
        %1695 = vst [vmem:[%s277 + $0x1c8] sm:$0xff] %v1618
        %1696 = vst [vmem:[%s277 + $0x1d0] sm:$0xff] %v1621
        %1697 = vst [vmem:[%s277 + $0x1d8] sm:$0xff] %v1624
        %1698 = vst [vmem:[%s277 + $0x1e0] sm:$0xff] %v1627
        %1699 = vst [vmem:[%s277 + $0x1e8] sm:$0xff] %v1630
        %1700 = vst [vmem:[%s277 + $0x1f0] sm:$0xff] %v1633
        %1701 = vst [vmem:[%s277 + $0x1f8] sm:$0xff] %v1636
        %s1702 = sand.u32 %s141, 1
        %s1703 = scalar_lea.sflag [#allocation4], %s1702
        %s1704 = sand.u32 %s141, 1
        %s1705 = smul.addr %s1704, 512
        %s1706 = scalar_lea.vmem [#allocation8], %s1705
        // Predicated region
        $region53: #{feed_forward.1} parent=39 // pred_check
          %p1707 = pneg %p151
        $region54: #{feed_forward.1} parent=39 // pred_check_branch
          %1709 = sbr.rel (%p1707) target = $region56
        $region55: #{feed_forward.1} parent=39 // pred_region
          %s1710 = smul.u32 64, %s23
          %1712 = vsyncadd %s1703, 0
          %s1713 = smul.addr %s1710, 8
          %s1714 = scalar_lea.hbm %s5, %s1713
          %s1715 = sshll.u32 %s1706, 4
          %s1716 = int_to_ptr.vmem [resolvable:$true] %s1715
          %s1717 = sshll.u32 %s1714, 4
          %s1718 = int_to_ptr.hbm [resolvable:$true] %s1717
          %1723 = dma.vmem_to_hbm [thread:$0]  %s1716, 8192, %s1718, %s1703, 128, 128, 8
        $region56: #{feed_forward.1} parent=39 // pred_fallthru
          _
      $region40: #{feed_forward.1} parent=5 // pred_fallthru
        _
      %p1724 = scmp.le.s32.totalorder 2, %s18
      // Predicated region
      $region57: #{feed_forward.1} parent=5 // pred_check
        %p1725 = pneg %p1724
      $region58: #{feed_forward.1} parent=5 // pred_check_branch
        %1727 = sbr.rel (%p1725) target = $region60
      $region59: #{feed_forward.1} parent=5 // pred_region
        %s1728 = ssub.s32 %s18, 2
        // Predicated region
        $region61: #{feed_forward.1} parent=59 // pred_check
          %p1729 = pneg %p157
        $region62: #{feed_forward.1} parent=59 // pred_check_branch
          %1731 = sbr.rel (%p1729) target = $region64
        $region63: #{feed_forward.1} parent=59 // pred_region
          %s1732 = sand.u32 %s142, 1
          %s1733 = scalar_lea.sflag [#allocation4], %s1732
          %s1734 = sand.u32 %s142, 1
          %s1735 = smul.addr %s1734, 512
          %s1736 = scalar_lea.vmem [#allocation8], %s1735
          %1738 = dma.done %s1733, 8192
        $region64: #{feed_forward.1} parent=59 // pred_fallthru
          _
      $region60: #{feed_forward.1} parent=5 // pred_fallthru
        _
    $region6: #{feed_forward.1} parent=1 // loop_footer
      %s22 = sadd.s32 1, %s18
    $region7: #{feed_forward.1} parent=1 // loop_footer_branch
      %17 = sbr.rel target = $region3
    $region8: #{feed_forward.1} parent=1 // loop_exit
      _
    %1739 = vsyncpa [#allocation3], 1
    %s1740 = scalar_lea.sflag [#allocation3], 1
    %1741 = vsyncpa %s1740, 1
    %1742 = vsyncpa [#allocation6], 1
    %1743 = vsyncpa [#allocation4], 1
    %s1744 = scalar_lea.sflag [#allocation4], 1
    %1745 = vsyncpa %s1744, 1

</llo_original>
